<compile_context>
chip_gen: v6e
topology: v6e:2x2x1
jax: 0.10.0
libtpu: 0.0.40
codegen_flags: <defaults>
</compile_context>

<pallas_src>
import functools

import jax
import jax.numpy as jnp
from jax.experimental import pallas as pl
from jax.experimental.pallas import tpu as pltpu


def _round_up(v, m):
    return ((v + m - 1) // m) * m


def _vmem_budget_bytes():
    """Physical VMEM minus headroom for compiler scratch / spill space."""
    try:
        cap = int(pltpu.get_tpu_info().vmem_capacity_bytes)
    except Exception:  # pragma: no cover - conservative fallback (v7x per-TC)
        cap = 64 << 20
    # Never ask for more than ~80% of physical (and keep >= 8 MiB headroom).
    return max(16 << 20, min(cap - (8 << 20), (cap * 4) // 5))


def _block2_kernel(x_ref,
                   wa_ref, ba_ref,
                   wb_ref, bb_ref,
                   wc_ref, bc_ref,
                   wd_ref, bd_ref,
                   o_ref, *, compute_dtype):
    # x block: (1, C, tile_L) -> (C, tile_L); channels on sublanes, L on lanes.
    x = x_ref[0].astype(jnp.float32)
    x2 = x + x  # in-place doubled identity, needed only for the residual

    def matmul(w_ref, act):
        return jnp.dot(w_ref[...], act.astype(compute_dtype),
                       preferred_element_type=jnp.float32)

    # Wa/Wb/Wc already carry the 2.0 factor (folded in the wrapper).
    y1 = jnp.maximum(matmul(wa_ref, x) + ba_ref[...], 0.0)
    y2 = jnp.maximum(matmul(wb_ref, y1) + bb_ref[...], 0.0)
    y3 = jnp.maximum(matmul(wc_ref, y2) + bc_ref[...], 0.0)
    out = jnp.maximum(matmul(wd_ref, y3 + x2) + bd_ref[...], 0.0)

    o_ref[0] = out.astype(o_ref.dtype)


def basic_block_2_pallas(x_ncl, params, *, tile_l=None):
    """x_ncl: (N, C, L) float32, PyTorch Conv1d layout. No layout transposes."""
    N, C, L = x_ncl.shape
    in_dtype = x_ncl.dtype

    # bf16 MXU path for compute-bound channel counts; exact f32 otherwise.
    compute_dtype = jnp.bfloat16 if C >= 512 else jnp.float32
    w_bytes = 2 if compute_dtype == jnp.bfloat16 else 4

    budget = _vmem_budget_bytes()

    # Resident parameter footprint (assuming single-buffered weights/biases).
    weight_bytes = 4 * C * C * w_bytes
    bias_bytes = 4 * C * 128 * 4          # (C, 1) blocks pad lanes to 128
    # Per-lane-column activation cost: double-buffered in/out tiles plus the
    # in-kernel f32 intermediates (x2, y1, y2, y3, pre-store out).
    per_col = C * (2 * 4 + 2 * 4 + 5 * 4)

    l_pad_full = _round_up(L, 128)
    if tile_l is None:
        avail = budget - weight_bytes - bias_bytes - (2 << 20)
        max_cols = (avail // per_col) if avail > 0 else 128
        max_tile = max(128, (int(max_cols) // 128) * 128)
        if l_pad_full <= max_tile:
            tile_l = l_pad_full                      # whole sequence per step
        else:
            n_tiles = -(-L // max_tile)              # balance tiles, minimize pad
            tile_l = max(128, _round_up(-(-L // n_tiles), 128))
    else:
        tile_l = min(max(128, _round_up(int(tile_l), 128)), l_pad_full)

    l_pad = _round_up(L, tile_l)
    x_p = x_ncl if l_pad == L else jnp.pad(x_ncl, ((0, 0), (0, 0), (0, l_pad - L)))

    (wa, ba), (wb, bb), (wc, bc), (wd, bd) = params
    # Fold the in-place 2x doubling into the first three weight matrices (exact
    # in f32, done once in the wrapper); cast weights for the MXU path.
    wa2 = (2.0 * wa).astype(compute_dtype)
    wb2 = (2.0 * wb).astype(compute_dtype)
    wc2 = (2.0 * wc).astype(compute_dtype)
    wd2 = wd.astype(compute_dtype)
    ba2, bb2, bc2, bd2 = (b.reshape(C, 1).astype(jnp.float32)
                          for b in (ba, bb, bc, bd))

    kernel = functools.partial(_block2_kernel, compute_dtype=compute_dtype)
    x_spec = pl.BlockSpec((1, C, tile_l), lambda n, l: (n, 0, l))
    out_spec = pl.BlockSpec((1, C, tile_l), lambda n, l: (n, 0, l))
    grid = (N, l_pad // tile_l)

    def build(single_buffer_weights):
        if single_buffer_weights:
            mode = pl.Buffered(1)   # constant index_map -> fetch once
            w_spec = pl.BlockSpec((C, C), lambda n, l: (0, 0), pipeline_mode=mode)
            b_spec = pl.BlockSpec((C, 1), lambda n, l: (0, 0), pipeline_mode=mode)
            wbuf = 1
        else:
            w_spec = pl.BlockSpec((C, C), lambda n, l: (0, 0))
            b_spec = pl.BlockSpec((C, 1), lambda n, l: (0, 0))
            wbuf = 2

        vmem_need = (wbuf * (weight_bytes + bias_bytes)
                     + per_col * tile_l + (2 << 20))
        vmem_limit = int(min(budget, max(vmem_need, 32 << 20)))

        return pl.pallas_call(
            kernel,
            out_shape=jax.ShapeDtypeStruct((N, C, l_pad), in_dtype),
            grid_spec=pltpu.PrefetchScalarGridSpec(
                num_scalar_prefetch=0,
                grid=grid,
                in_specs=[
                    x_spec,
                    w_spec, b_spec,
                    w_spec, b_spec,
                    w_spec, b_spec,
                    w_spec, b_spec,
                ],
                out_specs=out_spec),
            compiler_params=pltpu.CompilerParams(
                dimension_semantics=("parallel", "parallel"),
                vmem_limit_bytes=vmem_limit),
        )

    args = (x_p, wa2, ba2, wb2, bb2, wc2, bc2, wd2, bd2)
    try:
        out = build(True)(*args)
    except Exception:
        # pl.Buffered(1) not supported by this jax/chip combo: fall back to the
        # default double-buffered parameter pipeline (identical numerics).
        out = build(False)(*args)

    return out if l_pad == L else out[:, :, :L]


def make_params(key, c):
    """Deterministic parameters for the 4 live 1x1 convs.
    Weights are stored in PyTorch layout (C_out, C_in); biases as (C,)."""
    bound = 1.0 / jnp.sqrt(jnp.float32(c))
    params = []
    for i in range(4):
        kw, kb = jax.random.split(jax.random.fold_in(key, i))
        w = jax.random.uniform(kw, (c, c), jnp.float32, -bound, bound)
        b = jax.random.uniform(kb, (c,), jnp.float32, -bound, bound)
        params.append((w, b))
    return params


def basic_block_2_reference(x_ncl, params):
    """Pure-JAX reference of the traced PyTorch semantics (for validation)."""
    (wa, ba), (wb, bb), (wc, bc), (wd, bd) = params

    def conv1x1(x, w, b):  # x: (N, C_in, L); w: (C_out, C_in)
        return jnp.einsum("ncl,oc->nol", x, w) + b[None, :, None]

    x2 = 2.0 * x_ncl
    y1 = jax.nn.relu(conv1x1(x2, wa, ba))
    y2 = jax.nn.relu(conv1x1(2.0 * y1, wb, bb))
    y3 = jax.nn.relu(conv1x1(2.0 * y2, wc, bc))
    return jax.nn.relu(conv1x1(y3 + x2, wd, bd))


if __name__ == "__main__":
    N, C, L = 2, 8, 16
    key = jax.random.PRNGKey(0)
    kx, kp = jax.random.split(key)
    x = jax.random.normal(kx, (N, C, L), jnp.float32)
    params = make_params(kp, C)

    out = basic_block_2_pallas(x, params)
    out = jax.block_until_ready(out)

    ref = basic_block_2_reference(x, params)
    assert out.shape == (N, C, L)
    assert jnp.allclose(out, ref, atol=1e-5, rtol=1e-5)

    # TODO(synk): the tanh/sigmoid Conv1d(3) branches inside BasicBlock_0 are
    # dead compute (their results never reach the output) and are omitted.
    print("KERNEL_OK")
</pallas_src>

<mosaic_0001>
module attributes {stable_mosaic.version = 11 : i64} {
  func.func @_block2_kernel(%arg0: i32, %arg1: i32, %arg2: memref<1x8x128xf32, #tpu.memory_space<vmem>>, %arg3: memref<8x8xf32, #tpu.memory_space<vmem>>, %arg4: memref<8x1xf32, #tpu.memory_space<vmem>>, %arg5: memref<8x8xf32, #tpu.memory_space<vmem>>, %arg6: memref<8x1xf32, #tpu.memory_space<vmem>>, %arg7: memref<8x8xf32, #tpu.memory_space<vmem>>, %arg8: memref<8x1xf32, #tpu.memory_space<vmem>>, %arg9: memref<8x8xf32, #tpu.memory_space<vmem>>, %arg10: memref<8x1xf32, #tpu.memory_space<vmem>>, %arg11: memref<1x8x128xf32, #tpu.memory_space<vmem>>) attributes {dimension_semantics = [#tpu.dimension_semantics<parallel>, #tpu.dimension_semantics<parallel>], iteration_bounds = array<i64: 2, 1>, scalar_prefetch = 0 : i64, scratch_operands = 0 : i64, tpu.core_type = #tpu.core_type<tc>, window_params = [{transform_indices = @transform_0, window_bounds = array<i64: 1, 8, 128>}, {pipeline_mode = #tpu.pipeline_mode<synchronous>, transform_indices = @transform_1, window_bounds = array<i64: 8, 8>}, {pipeline_mode = #tpu.pipeline_mode<synchronous>, transform_indices = @transform_2, window_bounds = array<i64: 8, 1>}, {pipeline_mode = #tpu.pipeline_mode<synchronous>, transform_indices = @transform_3, window_bounds = array<i64: 8, 8>}, {pipeline_mode = #tpu.pipeline_mode<synchronous>, transform_indices = @transform_4, window_bounds = array<i64: 8, 1>}, {pipeline_mode = #tpu.pipeline_mode<synchronous>, transform_indices = @transform_5, window_bounds = array<i64: 8, 8>}, {pipeline_mode = #tpu.pipeline_mode<synchronous>, transform_indices = @transform_6, window_bounds = array<i64: 8, 1>}, {pipeline_mode = #tpu.pipeline_mode<synchronous>, transform_indices = @transform_7, window_bounds = array<i64: 8, 8>}, {pipeline_mode = #tpu.pipeline_mode<synchronous>, transform_indices = @transform_8, window_bounds = array<i64: 8, 1>}, {transform_indices = @transform_9, window_bounds = array<i64: 1, 8, 128>}]} {
    %c0 = arith.constant 0 : index
    %c0_0 = arith.constant 0 : index
    %c0_1 = arith.constant 0 : index
    %0 = vector.load %arg2[%c0, %c0_0, %c0_1] : memref<1x8x128xf32, #tpu.memory_space<vmem>>, vector<1x8x128xf32>
    %1 = vector.shape_cast %0 : vector<1x8x128xf32> to vector<8x128xf32>
    %2 = arith.addf %1, %1 : vector<8x128xf32>
    %c0_2 = arith.constant 0 : index
    %c0_3 = arith.constant 0 : index
    %3 = vector.load %arg3[%c0_2, %c0_3] : memref<8x8xf32, #tpu.memory_space<vmem>>, vector<8x8xf32>
    %cst = arith.constant dense<0.000000e+00> : vector<8x128xf32>
    %4 = tpu.matmul %3, %1, %cst {dimension_numbers = #tpu.dot_dimension_numbers<[1], [0], [0], [1], [0, 0, 1, 1], [], []>} : vector<8x8xf32>, vector<8x128xf32>, vector<8x128xf32> -> vector<8x128xf32>
    %c0_4 = arith.constant 0 : index
    %c0_5 = arith.constant 0 : index
    %5 = vector.load %arg4[%c0_4, %c0_5] : memref<8x1xf32, #tpu.memory_space<vmem>>, vector<8x1xf32>
    %6 = vector.broadcast %5 : vector<8x1xf32> to vector<8x128xf32>
    %7 = arith.addf %4, %6 : vector<8x128xf32>
    %cst_6 = arith.constant 0.000000e+00 : f32
    %8 = vector.broadcast %cst_6 : f32 to vector<8x128xf32>
    %9 = arith.maximumf %7, %8 : vector<8x128xf32>
    %c0_7 = arith.constant 0 : index
    %c0_8 = arith.constant 0 : index
    %10 = vector.load %arg5[%c0_7, %c0_8] : memref<8x8xf32, #tpu.memory_space<vmem>>, vector<8x8xf32>
    %cst_9 = arith.constant dense<0.000000e+00> : vector<8x128xf32>
    %11 = tpu.matmul %10, %9, %cst_9 {dimension_numbers = #tpu.dot_dimension_numbers<[1], [0], [0], [1], [0, 0, 1, 1], [], []>} : vector<8x8xf32>, vector<8x128xf32>, vector<8x128xf32> -> vector<8x128xf32>
    %c0_10 = arith.constant 0 : index
    %c0_11 = arith.constant 0 : index
    %12 = vector.load %arg6[%c0_10, %c0_11] : memref<8x1xf32, #tpu.memory_space<vmem>>, vector<8x1xf32>
    %13 = vector.broadcast %12 : vector<8x1xf32> to vector<8x128xf32>
    %14 = arith.addf %11, %13 : vector<8x128xf32>
    %cst_12 = arith.constant 0.000000e+00 : f32
    %15 = vector.broadcast %cst_12 : f32 to vector<8x128xf32>
    %16 = arith.maximumf %14, %15 : vector<8x128xf32>
    %c0_13 = arith.constant 0 : index
    %c0_14 = arith.constant 0 : index
    %17 = vector.load %arg7[%c0_13, %c0_14] : memref<8x8xf32, #tpu.memory_space<vmem>>, vector<8x8xf32>
    %cst_15 = arith.constant dense<0.000000e+00> : vector<8x128xf32>
    %18 = tpu.matmul %17, %16, %cst_15 {dimension_numbers = #tpu.dot_dimension_numbers<[1], [0], [0], [1], [0, 0, 1, 1], [], []>} : vector<8x8xf32>, vector<8x128xf32>, vector<8x128xf32> -> vector<8x128xf32>
    %c0_16 = arith.constant 0 : index
    %c0_17 = arith.constant 0 : index
    %19 = vector.load %arg8[%c0_16, %c0_17] : memref<8x1xf32, #tpu.memory_space<vmem>>, vector<8x1xf32>
    %20 = vector.broadcast %19 : vector<8x1xf32> to vector<8x128xf32>
    %21 = arith.addf %18, %20 : vector<8x128xf32>
    %cst_18 = arith.constant 0.000000e+00 : f32
    %22 = vector.broadcast %cst_18 : f32 to vector<8x128xf32>
    %23 = arith.maximumf %21, %22 : vector<8x128xf32>
    %24 = arith.addf %23, %2 : vector<8x128xf32>
    %c0_19 = arith.constant 0 : index
    %c0_20 = arith.constant 0 : index
    %25 = vector.load %arg9[%c0_19, %c0_20] : memref<8x8xf32, #tpu.memory_space<vmem>>, vector<8x8xf32>
    %cst_21 = arith.constant dense<0.000000e+00> : vector<8x128xf32>
    %26 = tpu.matmul %25, %24, %cst_21 {dimension_numbers = #tpu.dot_dimension_numbers<[1], [0], [0], [1], [0, 0, 1, 1], [], []>} : vector<8x8xf32>, vector<8x128xf32>, vector<8x128xf32> -> vector<8x128xf32>
    %c0_22 = arith.constant 0 : index
    %c0_23 = arith.constant 0 : index
    %27 = vector.load %arg10[%c0_22, %c0_23] : memref<8x1xf32, #tpu.memory_space<vmem>>, vector<8x1xf32>
    %28 = vector.broadcast %27 : vector<8x1xf32> to vector<8x128xf32>
    %29 = arith.addf %26, %28 : vector<8x128xf32>
    %cst_24 = arith.constant 0.000000e+00 : f32
    %30 = vector.broadcast %cst_24 : f32 to vector<8x128xf32>
    %31 = arith.maximumf %29, %30 : vector<8x128xf32>
    %c0_25 = arith.constant 0 : index
    %c0_26 = arith.constant 0 : index
    %c0_27 = arith.constant 0 : index
    %32 = vector.load %arg11[%c0_25, %c0_26, %c0_27] : memref<1x8x128xf32, #tpu.memory_space<vmem>>, vector<1x8x128xf32>
    %33 = vector.shape_cast %32 : vector<1x8x128xf32> to vector<8x128xf32>
    %34 = vector.shape_cast %31 : vector<8x128xf32> to vector<1x8x128xf32>
    tpu.vector_store %arg11[%c0_25, %c0_26, %c0_27], %34 {strides = array<i32>} : memref<1x8x128xf32, #tpu.memory_space<vmem>>, vector<1x8x128xf32>,
    return
  }
  func.func @transform_0(%arg0: i32, %arg1: i32) -> (i32, i32, i32) {
    %c0_i32 = arith.constant 0 : i32
    %c0_i32_0 = arith.constant 0 : i32
    return %arg0, %c0_i32, %arg1 : i32, i32, i32
  }
  func.func @transform_1(%arg0: i32, %arg1: i32) -> (i32, i32) {
    %c0_i32 = arith.constant 0 : i32
    %c0_i32_0 = arith.constant 0 : i32
    %c0_i32_1 = arith.constant 0 : i32
    return %c0_i32, %c0_i32_0 : i32, i32
  }
  func.func @transform_2(%arg0: i32, %arg1: i32) -> (i32, i32) {
    %c0_i32 = arith.constant 0 : i32
    %c0_i32_0 = arith.constant 0 : i32
    %c0_i32_1 = arith.constant 0 : i32
    return %c0_i32, %c0_i32_0 : i32, i32
  }
  func.func @transform_3(%arg0: i32, %arg1: i32) -> (i32, i32) {
    %c0_i32 = arith.constant 0 : i32
    %c0_i32_0 = arith.constant 0 : i32
    %c0_i32_1 = arith.constant 0 : i32
    return %c0_i32, %c0_i32_0 : i32, i32
  }
  func.func @transform_4(%arg0: i32, %arg1: i32) -> (i32, i32) {
    %c0_i32 = arith.constant 0 : i32
    %c0_i32_0 = arith.constant 0 : i32
    %c0_i32_1 = arith.constant 0 : i32
    return %c0_i32, %c0_i32_0 : i32, i32
  }
  func.func @transform_5(%arg0: i32, %arg1: i32) -> (i32, i32) {
    %c0_i32 = arith.constant 0 : i32
    %c0_i32_0 = arith.constant 0 : i32
    %c0_i32_1 = arith.constant 0 : i32
    return %c0_i32, %c0_i32_0 : i32, i32
  }
  func.func @transform_6(%arg0: i32, %arg1: i32) -> (i32, i32) {
    %c0_i32 = arith.constant 0 : i32
    %c0_i32_0 = arith.constant 0 : i32
    %c0_i32_1 = arith.constant 0 : i32
    return %c0_i32, %c0_i32_0 : i32, i32
  }
  func.func @transform_7(%arg0: i32, %arg1: i32) -> (i32, i32) {
    %c0_i32 = arith.constant 0 : i32
    %c0_i32_0 = arith.constant 0 : i32
    %c0_i32_1 = arith.constant 0 : i32
    return %c0_i32, %c0_i32_0 : i32, i32
  }
  func.func @transform_8(%arg0: i32, %arg1: i32) -> (i32, i32) {
    %c0_i32 = arith.constant 0 : i32
    %c0_i32_0 = arith.constant 0 : i32
    %c0_i32_1 = arith.constant 0 : i32
    return %c0_i32, %c0_i32_0 : i32, i32
  }
  func.func @transform_9(%arg0: i32, %arg1: i32) -> (i32, i32, i32) {
    %c0_i32 = arith.constant 0 : i32
    %c0_i32_0 = arith.constant 0 : i32
    return %arg0, %c0_i32, %arg1 : i32, i32, i32
  }
}

module attributes {stable_mosaic.version = 11 : i64} {
  func.func @_block2_kernel(%arg0: i32, %arg1: i32, %arg2: memref<1x8x128xf32, #tpu.memory_space<vmem>>, %arg3: memref<8x8xf32, #tpu.memory_space<vmem>>, %arg4: memref<8x1xf32, #tpu.memory_space<vmem>>, %arg5: memref<8x8xf32, #tpu.memory_space<vmem>>, %arg6: memref<8x1xf32, #tpu.memory_space<vmem>>, %arg7: memref<8x8xf32, #tpu.memory_space<vmem>>, %arg8: memref<8x1xf32, #tpu.memory_space<vmem>>, %arg9: memref<8x8xf32, #tpu.memory_space<vmem>>, %arg10: memref<8x1xf32, #tpu.memory_space<vmem>>, %arg11: memref<1x8x128xf32, #tpu.memory_space<vmem>>) attributes {dimension_semantics = [#tpu.dimension_semantics<parallel>, #tpu.dimension_semantics<parallel>], iteration_bounds = array<i64: 2, 1>, scalar_prefetch = 0 : i64, scratch_operands = 0 : i64, tpu.core_type = #tpu.core_type<tc>, window_params = [{transform_indices = @transform_0, window_bounds = array<i64: 1, 8, 128>}, {pipeline_mode = #tpu.pipeline_mode<synchronous>, transform_indices = @transform_1, window_bounds = array<i64: 8, 8>}, {pipeline_mode = #tpu.pipeline_mode<synchronous>, transform_indices = @transform_2, window_bounds = array<i64: 8, 1>}, {pipeline_mode = #tpu.pipeline_mode<synchronous>, transform_indices = @transform_3, window_bounds = array<i64: 8, 8>}, {pipeline_mode = #tpu.pipeline_mode<synchronous>, transform_indices = @transform_4, window_bounds = array<i64: 8, 1>}, {pipeline_mode = #tpu.pipeline_mode<synchronous>, transform_indices = @transform_5, window_bounds = array<i64: 8, 8>}, {pipeline_mode = #tpu.pipeline_mode<synchronous>, transform_indices = @transform_6, window_bounds = array<i64: 8, 1>}, {pipeline_mode = #tpu.pipeline_mode<synchronous>, transform_indices = @transform_7, window_bounds = array<i64: 8, 8>}, {pipeline_mode = #tpu.pipeline_mode<synchronous>, transform_indices = @transform_8, window_bounds = array<i64: 8, 1>}, {transform_indices = @transform_9, window_bounds = array<i64: 1, 8, 128>}]} {
    %c0 = arith.constant 0 : index
    %c0_0 = arith.constant 0 : index
    %c0_1 = arith.constant 0 : index
    %0 = vector.load %arg2[%c0, %c0_0, %c0_1] : memref<1x8x128xf32, #tpu.memory_space<vmem>>, vector<1x8x128xf32>
    %1 = vector.shape_cast %0 : vector<1x8x128xf32> to vector<8x128xf32>
    %2 = arith.addf %1, %1 : vector<8x128xf32>
    %c0_2 = arith.constant 0 : index
    %c0_3 = arith.constant 0 : index
    %3 = vector.load %arg3[%c0_2, %c0_3] : memref<8x8xf32, #tpu.memory_space<vmem>>, vector<8x8xf32>
    %cst = arith.constant dense<0.000000e+00> : vector<8x128xf32>
    %4 = tpu.matmul %3, %1, %cst {dimension_numbers = #tpu.dot_dimension_numbers<[1], [0], [0], [1], [0, 0, 1, 1], [], []>} : vector<8x8xf32>, vector<8x128xf32>, vector<8x128xf32> -> vector<8x128xf32>
    %c0_4 = arith.constant 0 : index
    %c0_5 = arith.constant 0 : index
    %5 = vector.load %arg4[%c0_4, %c0_5] : memref<8x1xf32, #tpu.memory_space<vmem>>, vector<8x1xf32>
    %6 = vector.broadcast %5 : vector<8x1xf32> to vector<8x128xf32>
    %7 = arith.addf %4, %6 : vector<8x128xf32>
    %cst_6 = arith.constant 0.000000e+00 : f32
    %8 = vector.broadcast %cst_6 : f32 to vector<8x128xf32>
    %9 = arith.maximumf %7, %8 : vector<8x128xf32>
    %c0_7 = arith.constant 0 : index
    %c0_8 = arith.constant 0 : index
    %10 = vector.load %arg5[%c0_7, %c0_8] : memref<8x8xf32, #tpu.memory_space<vmem>>, vector<8x8xf32>
    %cst_9 = arith.constant dense<0.000000e+00> : vector<8x128xf32>
    %11 = tpu.matmul %10, %9, %cst_9 {dimension_numbers = #tpu.dot_dimension_numbers<[1], [0], [0], [1], [0, 0, 1, 1], [], []>} : vector<8x8xf32>, vector<8x128xf32>, vector<8x128xf32> -> vector<8x128xf32>
    %c0_10 = arith.constant 0 : index
    %c0_11 = arith.constant 0 : index
    %12 = vector.load %arg6[%c0_10, %c0_11] : memref<8x1xf32, #tpu.memory_space<vmem>>, vector<8x1xf32>
    %13 = vector.broadcast %12 : vector<8x1xf32> to vector<8x128xf32>
    %14 = arith.addf %11, %13 : vector<8x128xf32>
    %cst_12 = arith.constant 0.000000e+00 : f32
    %15 = vector.broadcast %cst_12 : f32 to vector<8x128xf32>
    %16 = arith.maximumf %14, %15 : vector<8x128xf32>
    %c0_13 = arith.constant 0 : index
    %c0_14 = arith.constant 0 : index
    %17 = vector.load %arg7[%c0_13, %c0_14] : memref<8x8xf32, #tpu.memory_space<vmem>>, vector<8x8xf32>
    %cst_15 = arith.constant dense<0.000000e+00> : vector<8x128xf32>
    %18 = tpu.matmul %17, %16, %cst_15 {dimension_numbers = #tpu.dot_dimension_numbers<[1], [0], [0], [1], [0, 0, 1, 1], [], []>} : vector<8x8xf32>, vector<8x128xf32>, vector<8x128xf32> -> vector<8x128xf32>
    %c0_16 = arith.constant 0 : index
    %c0_17 = arith.constant 0 : index
    %19 = vector.load %arg8[%c0_16, %c0_17] : memref<8x1xf32, #tpu.memory_space<vmem>>, vector<8x1xf32>
    %20 = vector.broadcast %19 : vector<8x1xf32> to vector<8x128xf32>
    %21 = arith.addf %18, %20 : vector<8x128xf32>
    %cst_18 = arith.constant 0.000000e+00 : f32
    %22 = vector.broadcast %cst_18 : f32 to vector<8x128xf32>
    %23 = arith.maximumf %21, %22 : vector<8x128xf32>
    %24 = arith.addf %23, %2 : vector<8x128xf32>
    %c0_19 = arith.constant 0 : index
    %c0_20 = arith.constant 0 : index
    %25 = vector.load %arg9[%c0_19, %c0_20] : memref<8x8xf32, #tpu.memory_space<vmem>>, vector<8x8xf32>
    %cst_21 = arith.constant dense<0.000000e+00> : vector<8x128xf32>
    %26 = tpu.matmul %25, %24, %cst_21 {dimension_numbers = #tpu.dot_dimension_numbers<[1], [0], [0], [1], [0, 0, 1, 1], [], []>} : vector<8x8xf32>, vector<8x128xf32>, vector<8x128xf32> -> vector<8x128xf32>
    %c0_22 = arith.constant 0 : index
    %c0_23 = arith.constant 0 : index
    %27 = vector.load %arg10[%c0_22, %c0_23] : memref<8x1xf32, #tpu.memory_space<vmem>>, vector<8x1xf32>
    %28 = vector.broadcast %27 : vector<8x1xf32> to vector<8x128xf32>
    %29 = arith.addf %26, %28 : vector<8x128xf32>
    %cst_24 = arith.constant 0.000000e+00 : f32
    %30 = vector.broadcast %cst_24 : f32 to vector<8x128xf32>
    %31 = arith.maximumf %29, %30 : vector<8x128xf32>
    %c0_25 = arith.constant 0 : index
    %c0_26 = arith.constant 0 : index
    %c0_27 = arith.constant 0 : index
    %32 = vector.load %arg11[%c0_25, %c0_26, %c0_27] : memref<1x8x128xf32, #tpu.memory_space<vmem>>, vector<1x8x128xf32>
    %33 = vector.shape_cast %32 : vector<1x8x128xf32> to vector<8x128xf32>
    %34 = vector.shape_cast %31 : vector<8x128xf32> to vector<1x8x128xf32>
    tpu.vector_store %arg11[%c0_25, %c0_26, %c0_27], %34 {strides = array<i32>} : memref<1x8x128xf32, #tpu.memory_space<vmem>>, vector<1x8x128xf32>,
    return
  }
  func.func @transform_0(%arg0: i32, %arg1: i32) -> (i32, i32, i32) {
    %c0_i32 = arith.constant 0 : i32
    %c0_i32_0 = arith.constant 0 : i32
    return %arg0, %c0_i32, %arg1 : i32, i32, i32
  }
  func.func @transform_1(%arg0: i32, %arg1: i32) -> (i32, i32) {
    %c0_i32 = arith.constant 0 : i32
    %c0_i32_0 = arith.constant 0 : i32
    %c0_i32_1 = arith.constant 0 : i32
    return %c0_i32, %c0_i32_0 : i32, i32
  }
  func.func @transform_2(%arg0: i32, %arg1: i32) -> (i32, i32) {
    %c0_i32 = arith.constant 0 : i32
    %c0_i32_0 = arith.constant 0 : i32
    %c0_i32_1 = arith.constant 0 : i32
    return %c0_i32, %c0_i32_0 : i32, i32
  }
  func.func @transform_3(%arg0: i32, %arg1: i32) -> (i32, i32) {
    %c0_i32 = arith.constant 0 : i32
    %c0_i32_0 = arith.constant 0 : i32
    %c0_i32_1 = arith.constant 0 : i32
    return %c0_i32, %c0_i32_0 : i32, i32
  }
  func.func @transform_4(%arg0: i32, %arg1: i32) -> (i32, i32) {
    %c0_i32 = arith.constant 0 : i32
    %c0_i32_0 = arith.constant 0 : i32
    %c0_i32_1 = arith.constant 0 : i32
    return %c0_i32, %c0_i32_0 : i32, i32
  }
  func.func @transform_5(%arg0: i32, %arg1: i32) -> (i32, i32) {
    %c0_i32 = arith.constant 0 : i32
    %c0_i32_0 = arith.constant 0 : i32
    %c0_i32_1 = arith.constant 0 : i32
    return %c0_i32, %c0_i32_0 : i32, i32
  }
  func.func @transform_6(%arg0: i32, %arg1: i32) -> (i32, i32) {
    %c0_i32 = arith.constant 0 : i32
    %c0_i32_0 = arith.constant 0 : i32
    %c0_i32_1 = arith.constant 0 : i32
    return %c0_i32, %c0_i32_0 : i32, i32
  }
  func.func @transform_7(%arg0: i32, %arg1: i32) -> (i32, i32) {
    %c0_i32 = arith.constant 0 : i32
    %c0_i32_0 = arith.constant 0 : i32
    %c0_i32_1 = arith.constant 0 : i32
    return %c0_i32, %c0_i32_0 : i32, i32
  }
  func.func @transform_8(%arg0: i32, %arg1: i32) -> (i32, i32) {
    %c0_i32 = arith.constant 0 : i32
    %c0_i32_0 = arith.constant 0 : i32
    %c0_i32_1 = arith.constant 0 : i32
    return %c0_i32, %c0_i32_0 : i32, i32
  }
  func.func @transform_9(%arg0: i32, %arg1: i32) -> (i32, i32, i32) {
    %c0_i32 = arith.constant 0 : i32
    %c0_i32_0 = arith.constant 0 : i32
    return %arg0, %c0_i32, %arg1 : i32, i32, i32
  }
}

</mosaic_0001>

<llo_original>
// kernel: tpu_custom_call.1
$region0: #{tpu_custom_call.1}
  #allocation0 [shape = 'u32[]', space=smem, size = 0x4, offset = 0x4, fixed_abs, tag = 'smem constant byte address 0x4 - core index']
  #allocation1 [shape = 'u32[144,128]{1,0:T(1,128)}', space=vmem, size = 0x12000, scoped, tag = 'internal scratch']
  %s0 = inlined_call_operand.vmem [shape: f32[2,8,128], index: 0, kind: input, shape index: {}]
  %s1 = inlined_call_operand.vmem [shape: f32[8,8], index: 1, kind: input, shape index: {}]
  %s2 = inlined_call_operand.vmem [shape: f32[8,1], index: 2, kind: input, shape index: {}]
  %s3 = inlined_call_operand.vmem [shape: f32[8,8], index: 3, kind: input, shape index: {}]
  %s4 = inlined_call_operand.vmem [shape: f32[8,1], index: 4, kind: input, shape index: {}]
  %s5 = inlined_call_operand.vmem [shape: f32[8,8], index: 5, kind: input, shape index: {}]
  %s6 = inlined_call_operand.vmem [shape: f32[8,1], index: 6, kind: input, shape index: {}]
  %s7 = inlined_call_operand.vmem [shape: f32[8,8], index: 7, kind: input, shape index: {}]
  %s8 = inlined_call_operand.vmem [shape: f32[8,1], index: 8, kind: input, shape index: {}]
  %s9 = inlined_call_operand.hbm [shape: f32[2,8,128], index: 9, kind: output, shape index: {}]
  %s10 = sld [smem:[#allocation0]]
  $region69: #{tpu_custom_call.1} parent=0
    _
  %s12 = ssub.s32 1, %s10
  %s13 = scalar_select 0, %s12, %s10
  $region1: #{tpu_custom_call.1} parent=0
    #allocation2 [shape = 'u8[8192]{0}', space=vmem, size = 0x2000, scoped, tag = 'output window, operand 0']
    #allocation3 [shape = 's32[2]{0}', space=sflag, size = 0x8, scoped, tag = 'scoped memory for tpu_custom_call.1']
    %14 = vsyncpa [#allocation3], 0
    %s15 = scalar_lea.sflag [#allocation3], 1
    %16 = vsyncpa %s15, 0
    loop: start=0, step=1, limit=4
    $region2: #{tpu_custom_call.1} parent=1 // loop_pre_header
      _
    $region3: #{tpu_custom_call.1} parent=1 // loop_header
      %s18 = sphi 0, %s22
      %p19 = scmp.ge.s32.totalorder %s18, 4
      %s25 = sphi 0, %s37
      %s26 = sphi 0, %s33
      %s27 = sphi 0, %s25
      %s28 = sphi 0, %s26
      %s29 = sphi 0, %s27
      %s30 = sphi 0, %s28
      %s42 = sphi 0, %s44
      %s45 = sphi 0, %s42
      %s46 = sphi 0, %s45
      %s62 = sphi 0, %s46
      %s66 = sphi 0, %s66
      %s68 = sphi 0, %s66
      %s69 = sphi 0, %s68
      %s83 = sphi 0, %s69
      %s87 = sphi 0, %s87
      %s89 = sphi 0, %s87
      %s90 = sphi 0, %s89
      %s104 = sphi 0, %s90
      %s108 = sphi 0, %s108
      %s110 = sphi 0, %s108
      %s111 = sphi 0, %s110
      %s125 = sphi 0, %s111
      %s129 = sphi 0, %s129
      %s131 = sphi 0, %s129
      %s132 = sphi 0, %s131
      %s146 = sphi 0, %s132
      %s150 = sphi 0, %s150
      %s152 = sphi 0, %s150
      %s153 = sphi 0, %s152
      %s167 = sphi 0, %s153
      %s171 = sphi 0, %s171
      %s173 = sphi 0, %s171
      %s174 = sphi 0, %s173
      %s188 = sphi 0, %s174
      %s192 = sphi 0, %s192
      %s194 = sphi 0, %s192
      %s195 = sphi 0, %s194
      %s209 = sphi 0, %s195
      %s213 = sphi 0, %s213
      %s215 = sphi 0, %s213
      %s216 = sphi 0, %s215
      %s230 = sphi 0, %s216
      %s238 = sphi 0, %s240
      %s241 = sphi 0, %s238
      %s242 = sphi 0, %s241
      %s258 = sphi 0, %s242
    $region4: #{tpu_custom_call.1} parent=1 // loop_header_branch
      %21 = sbr.rel (%p19) target = $region8
    $region5: #{tpu_custom_call.1} parent=1 // loop_body
      %s23 = ssub.s32 %s18, 1
      %s24 = ssub.s32 %s18, 2
      %s31 = sadd.s32 1, %s26
      %p32 = scmp.ge.s32.totalorder %s31, 1
      %s33 = scalar_select %p32, 0, %s31
      %s34 = sadd.s32 1, %s25
      %s35 = scalar_select %p32, %s34, %s25
      %p36 = scmp.ge.s32.totalorder %s35, 2
      %s37 = scalar_select %p36, 0, %s35
      %s38 = ssub.s32 %s25, %s37
      %s39 = ssub.s32 %s26, %s33
      %s40 = sor.u32 %s38, %s39
      %p41 = scmp.eq.s32.totalorder %s40, 0
      %s43 = sadd.s32 %s42, 1
      %s44 = scalar_select %p41, %s42, %s43
      %p47 = pneg %p41
      %p48 = scmp.eq.s32.totalorder %s18, 1
      %p49 = por %p47, %p48
      %p50 = scmp.ne.s32.totalorder %s42, %s45
      %p51 = scmp.eq.s32.totalorder %s18, 0
      %p52 = por %p50, %p51
      %p53 = scmp.ne.s32.totalorder %s42, %s45
      %p54 = scmp.eq.s32.totalorder %s23, 1
      %p55 = por %p53, %p54
      %p56 = scmp.ne.s32.totalorder %s45, %s46
      %p57 = scmp.eq.s32.totalorder %s23, 0
      %p58 = por %p56, %p57
      %p59 = scmp.ne.s32.totalorder %s45, %s46
      %p60 = scmp.eq.s32.totalorder %s24, 1
      %p61 = por %p59, %p60
      %p63 = scmp.ne.s32.totalorder %s46, %s62
      %p64 = scmp.eq.s32.totalorder %s24, 0
      %p65 = por %p63, %p64
      %s67 = sadd.s32 %s66, 1
      %p70 = scmp.eq.s32.totalorder %s18, 1
      %p71 = scmp.ne.s32.totalorder %s66, %s68
      %p72 = scmp.eq.s32.totalorder %s18, 0
      %p73 = por %p71, %p72
      %p74 = scmp.ne.s32.totalorder %s66, %s68
      %p75 = scmp.eq.s32.totalorder %s23, 1
      %p76 = por %p74, %p75
      %p77 = scmp.ne.s32.totalorder %s68, %s69
      %p78 = scmp.eq.s32.totalorder %s23, 0
      %p79 = por %p77, %p78
      %p80 = scmp.ne.s32.totalorder %s68, %s69
      %p81 = scmp.eq.s32.totalorder %s24, 1
      %p82 = por %p80, %p81
      %p84 = scmp.ne.s32.totalorder %s69, %s83
      %p85 = scmp.eq.s32.totalorder %s24, 0
      %p86 = por %p84, %p85
      %s88 = sadd.s32 %s87, 1
      %p91 = scmp.eq.s32.totalorder %s18, 1
      %p92 = scmp.ne.s32.totalorder %s87, %s89
      %p93 = scmp.eq.s32.totalorder %s18, 0
      %p94 = por %p92, %p93
      %p95 = scmp.ne.s32.totalorder %s87, %s89
      %p96 = scmp.eq.s32.totalorder %s23, 1
      %p97 = por %p95, %p96
      %p98 = scmp.ne.s32.totalorder %s89, %s90
      %p99 = scmp.eq.s32.totalorder %s23, 0
      %p100 = por %p98, %p99
      %p101 = scmp.ne.s32.totalorder %s89, %s90
      %p102 = scmp.eq.s32.totalorder %s24, 1
      %p103 = por %p101, %p102
      %p105 = scmp.ne.s32.totalorder %s90, %s104
      %p106 = scmp.eq.s32.totalorder %s24, 0
      %p107 = por %p105, %p106
      %s109 = sadd.s32 %s108, 1
      %p112 = scmp.eq.s32.totalorder %s18, 1
      %p113 = scmp.ne.s32.totalorder %s108, %s110
      %p114 = scmp.eq.s32.totalorder %s18, 0
      %p115 = por %p113, %p114
      %p116 = scmp.ne.s32.totalorder %s108, %s110
      %p117 = scmp.eq.s32.totalorder %s23, 1
      %p118 = por %p116, %p117
      %p119 = scmp.ne.s32.totalorder %s110, %s111
      %p120 = scmp.eq.s32.totalorder %s23, 0
      %p121 = por %p119, %p120
      %p122 = scmp.ne.s32.totalorder %s110, %s111
      %p123 = scmp.eq.s32.totalorder %s24, 1
      %p124 = por %p122, %p123
      %p126 = scmp.ne.s32.totalorder %s111, %s125
      %p127 = scmp.eq.s32.totalorder %s24, 0
      %p128 = por %p126, %p127
      %s130 = sadd.s32 %s129, 1
      %p133 = scmp.eq.s32.totalorder %s18, 1
      %p134 = scmp.ne.s32.totalorder %s129, %s131
      %p135 = scmp.eq.s32.totalorder %s18, 0
      %p136 = por %p134, %p135
      %p137 = scmp.ne.s32.totalorder %s129, %s131
      %p138 = scmp.eq.s32.totalorder %s23, 1
      %p139 = por %p137, %p138
      %p140 = scmp.ne.s32.totalorder %s131, %s132
      %p141 = scmp.eq.s32.totalorder %s23, 0
      %p142 = por %p140, %p141
      %p143 = scmp.ne.s32.totalorder %s131, %s132
      %p144 = scmp.eq.s32.totalorder %s24, 1
      %p145 = por %p143, %p144
      %p147 = scmp.ne.s32.totalorder %s132, %s146
      %p148 = scmp.eq.s32.totalorder %s24, 0
      %p149 = por %p147, %p148
      %s151 = sadd.s32 %s150, 1
      %p154 = scmp.eq.s32.totalorder %s18, 1
      %p155 = scmp.ne.s32.totalorder %s150, %s152
      %p156 = scmp.eq.s32.totalorder %s18, 0
      %p157 = por %p155, %p156
      %p158 = scmp.ne.s32.totalorder %s150, %s152
      %p159 = scmp.eq.s32.totalorder %s23, 1
      %p160 = por %p158, %p159
      %p161 = scmp.ne.s32.totalorder %s152, %s153
      %p162 = scmp.eq.s32.totalorder %s23, 0
      %p163 = por %p161, %p162
      %p164 = scmp.ne.s32.totalorder %s152, %s153
      %p165 = scmp.eq.s32.totalorder %s24, 1
      %p166 = por %p164, %p165
      %p168 = scmp.ne.s32.totalorder %s153, %s167
      %p169 = scmp.eq.s32.totalorder %s24, 0
      %p170 = por %p168, %p169
      %s172 = sadd.s32 %s171, 1
      %p175 = scmp.eq.s32.totalorder %s18, 1
      %p176 = scmp.ne.s32.totalorder %s171, %s173
      %p177 = scmp.eq.s32.totalorder %s18, 0
      %p178 = por %p176, %p177
      %p179 = scmp.ne.s32.totalorder %s171, %s173
      %p180 = scmp.eq.s32.totalorder %s23, 1
      %p181 = por %p179, %p180
      %p182 = scmp.ne.s32.totalorder %s173, %s174
      %p183 = scmp.eq.s32.totalorder %s23, 0
      %p184 = por %p182, %p183
      %p185 = scmp.ne.s32.totalorder %s173, %s174
      %p186 = scmp.eq.s32.totalorder %s24, 1
      %p187 = por %p185, %p186
      %p189 = scmp.ne.s32.totalorder %s174, %s188
      %p190 = scmp.eq.s32.totalorder %s24, 0
      %p191 = por %p189, %p190
      %s193 = sadd.s32 %s192, 1
      %p196 = scmp.eq.s32.totalorder %s18, 1
      %p197 = scmp.ne.s32.totalorder %s192, %s194
      %p198 = scmp.eq.s32.totalorder %s18, 0
      %p199 = por %p197, %p198
      %p200 = scmp.ne.s32.totalorder %s192, %s194
      %p201 = scmp.eq.s32.totalorder %s23, 1
      %p202 = por %p200, %p201
      %p203 = scmp.ne.s32.totalorder %s194, %s195
      %p204 = scmp.eq.s32.totalorder %s23, 0
      %p205 = por %p203, %p204
      %p206 = scmp.ne.s32.totalorder %s194, %s195
      %p207 = scmp.eq.s32.totalorder %s24, 1
      %p208 = por %p206, %p207
      %p210 = scmp.ne.s32.totalorder %s195, %s209
      %p211 = scmp.eq.s32.totalorder %s24, 0
      %p212 = por %p210, %p211
      %s214 = sadd.s32 %s213, 1
      %p217 = scmp.eq.s32.totalorder %s18, 1
      %p218 = scmp.ne.s32.totalorder %s213, %s215
      %p219 = scmp.eq.s32.totalorder %s18, 0
      %p220 = por %p218, %p219
      %p221 = scmp.ne.s32.totalorder %s213, %s215
      %p222 = scmp.eq.s32.totalorder %s23, 1
      %p223 = por %p221, %p222
      %p224 = scmp.ne.s32.totalorder %s215, %s216
      %p225 = scmp.eq.s32.totalorder %s23, 0
      %p226 = por %p224, %p225
      %p227 = scmp.ne.s32.totalorder %s215, %s216
      %p228 = scmp.eq.s32.totalorder %s24, 1
      %p229 = por %p227, %p228
      %p231 = scmp.ne.s32.totalorder %s216, %s230
      %p232 = scmp.eq.s32.totalorder %s24, 0
      %p233 = por %p231, %p232
      %s234 = ssub.s32 %s25, %s37
      %s235 = ssub.s32 %s26, %s33
      %s236 = sor.u32 %s234, %s235
      %p237 = scmp.eq.s32.totalorder %s236, 0
      %s239 = sadd.s32 %s238, 1
      %s240 = scalar_select %p237, %s238, %s239
      %p243 = pneg %p237
      %p244 = scmp.eq.s32.totalorder %s18, 1
      %p245 = por %p243, %p244
      %p246 = scmp.ne.s32.totalorder %s238, %s241
      %p247 = scmp.eq.s32.totalorder %s18, 0
      %p248 = por %p246, %p247
      %p249 = scmp.ne.s32.totalorder %s238, %s241
      %p250 = scmp.eq.s32.totalorder %s23, 1
      %p251 = por %p249, %p250
      %p252 = scmp.ne.s32.totalorder %s241, %s242
      %p253 = scmp.eq.s32.totalorder %s23, 0
      %p254 = por %p252, %p253
      %p255 = scmp.ne.s32.totalorder %s241, %s242
      %p256 = scmp.eq.s32.totalorder %s24, 1
      %p257 = por %p255, %p256
      %p259 = scmp.ne.s32.totalorder %s242, %s258
      %p260 = scmp.eq.s32.totalorder %s24, 0
      %p261 = por %p259, %p260
      %p262 = scmp.le.s32.totalorder 1, %s18
      %p263 = scmp.lt.s32.totalorder %s18, 3
      %p264 = pnand %p262, %p263
      %p265 = pneg %p264
      // Predicated region
      $region9: #{tpu_custom_call.1} parent=5 // pred_check
        _
      $region10: #{tpu_custom_call.1} parent=5 // pred_check_branch
        %267 = sbr.rel (%p264) target = $region12
      $region11: #{tpu_custom_call.1} parent=5 // pred_region
        %s268 = ssub.s32 %s18, 1
        // Predicated region
        $region13: #{tpu_custom_call.1} parent=11 // pred_check
          %p269 = pneg %p79
        $region14: #{tpu_custom_call.1} parent=11 // pred_check_branch
          %271 = sbr.rel (%p269) target = $region16
        $region15: #{tpu_custom_call.1} parent=11 // pred_region
          _
        $region16: #{tpu_custom_call.1} parent=11 // pred_fallthru
          _
        // Predicated region
        $region17: #{tpu_custom_call.1} parent=11 // pred_check
          %p272 = pneg %p100
        $region18: #{tpu_custom_call.1} parent=11 // pred_check_branch
          %274 = sbr.rel (%p272) target = $region20
        $region19: #{tpu_custom_call.1} parent=11 // pred_region
          _
        $region20: #{tpu_custom_call.1} parent=11 // pred_fallthru
          _
        // Predicated region
        $region21: #{tpu_custom_call.1} parent=11 // pred_check
          %p275 = pneg %p121
        $region22: #{tpu_custom_call.1} parent=11 // pred_check_branch
          %277 = sbr.rel (%p275) target = $region24
        $region23: #{tpu_custom_call.1} parent=11 // pred_region
          _
        $region24: #{tpu_custom_call.1} parent=11 // pred_fallthru
          _
        // Predicated region
        $region25: #{tpu_custom_call.1} parent=11 // pred_check
          %p278 = pneg %p142
        $region26: #{tpu_custom_call.1} parent=11 // pred_check_branch
          %280 = sbr.rel (%p278) target = $region28
        $region27: #{tpu_custom_call.1} parent=11 // pred_region
          _
        $region28: #{tpu_custom_call.1} parent=11 // pred_fallthru
          _
        // Predicated region
        $region29: #{tpu_custom_call.1} parent=11 // pred_check
          %p281 = pneg %p163
        $region30: #{tpu_custom_call.1} parent=11 // pred_check_branch
          %283 = sbr.rel (%p281) target = $region32
        $region31: #{tpu_custom_call.1} parent=11 // pred_region
          _
        $region32: #{tpu_custom_call.1} parent=11 // pred_fallthru
          _
        // Predicated region
        $region33: #{tpu_custom_call.1} parent=11 // pred_check
          %p284 = pneg %p184
        $region34: #{tpu_custom_call.1} parent=11 // pred_check_branch
          %286 = sbr.rel (%p284) target = $region36
        $region35: #{tpu_custom_call.1} parent=11 // pred_region
          _
        $region36: #{tpu_custom_call.1} parent=11 // pred_fallthru
          _
        // Predicated region
        $region37: #{tpu_custom_call.1} parent=11 // pred_check
          %p287 = pneg %p205
        $region38: #{tpu_custom_call.1} parent=11 // pred_check_branch
          %289 = sbr.rel (%p287) target = $region40
        $region39: #{tpu_custom_call.1} parent=11 // pred_region
          _
        $region40: #{tpu_custom_call.1} parent=11 // pred_fallthru
          _
        // Predicated region
        $region41: #{tpu_custom_call.1} parent=11 // pred_check
          %p290 = pneg %p226
        $region42: #{tpu_custom_call.1} parent=11 // pred_check_branch
          %292 = sbr.rel (%p290) target = $region44
        $region43: #{tpu_custom_call.1} parent=11 // pred_region
          _
        $region44: #{tpu_custom_call.1} parent=11 // pred_fallthru
          _
      $region12: #{tpu_custom_call.1} parent=5 // pred_fallthru
        _
      %p293 = scmp.lt.s32.totalorder %s18, 2
      // Predicated region
      $region45: #{tpu_custom_call.1} parent=5 // pred_check
        %p294 = pneg %p293
      $region46: #{tpu_custom_call.1} parent=5 // pred_check_branch
        %296 = sbr.rel (%p294) target = $region48
      $region47: #{tpu_custom_call.1} parent=5 // pred_region
        // Predicated region
        $region49: #{tpu_custom_call.1} parent=47 // pred_check
          %p297 = pneg %p52
        $region50: #{tpu_custom_call.1} parent=47 // pred_check_branch
          %299 = sbr.rel (%p297) target = $region52
        $region51: #{tpu_custom_call.1} parent=47 // pred_region
          %p300 = scmp.lt.s32.totalorder %s25, 1
          %s301 = scalar_select %p300, %s25, 1
          %p302 = scmp.lt.s32.totalorder %s26, 0
          %s303 = scalar_select %p302, %s26, 0
          %s304 = sadd.s32 %s303, %s301
          %s305 = smul.addr %s304, 8
          %s306 = scalar_lea.vmem %s0, %s305
        $region52: #{tpu_custom_call.1} parent=47 // pred_fallthru
          _
      $region48: #{tpu_custom_call.1} parent=5 // pred_fallthru
        _
      %p307 = scmp.le.s32.totalorder 1, %s18
      %p308 = scmp.lt.s32.totalorder %s18, 3
      %p309 = pnand %p307, %p308
      %p310 = pneg %p309
      // Predicated region
      $region53: #{tpu_custom_call.1} parent=5 // pred_check
        _
      $region54: #{tpu_custom_call.1} parent=5 // pred_check_branch
        %312 = sbr.rel (%p309) target = $region56
      $region55: #{tpu_custom_call.1} parent=5 // pred_region
        %s313 = ssub.s32 %s18, 1
        %p314 = scmp.lt.s32.totalorder %s27, 1
        %s315 = scalar_select %p314, %s27, 1
        %p316 = scmp.lt.s32.totalorder %s28, 0
        %s317 = scalar_select %p316, %s28, 0
        %s318 = sadd.s32 %s317, %s315
        %s319 = smul.addr %s318, 8
        %s320 = scalar_lea.vmem %s0, %s319
        %p321 = pneg %p58
        %p322 = pneg %p55
        %p323 = pneg %p79
        %p324 = pneg %p76
        %p325 = pneg %p100
        %p326 = pneg %p97
        %p327 = pneg %p121
        %p328 = pneg %p118
        %p329 = pneg %p142
        %p330 = pneg %p139
        %p331 = pneg %p163
        %p332 = pneg %p160
        %p333 = pneg %p184
        %p334 = pneg %p181
        %p335 = pneg %p205
        %p336 = pneg %p202
        %p337 = pneg %p226
        %p338 = pneg %p223
        %p339 = pneg %p254
        %p340 = pneg %p251
        %s341 = sand.u32 %s241, 1
        %s342 = scalar_lea.sflag [#allocation3], %s341
        %s343 = sand.u32 %s241, 1
        %s344 = smul.addr %s343, 8
        %s345 = scalar_lea.vmem [#allocation2], %s344
        %p346 = scmp.lt.s32.totalorder %s27, 1
        %s347 = scalar_select %p346, %s27, 1
        %p348 = scmp.lt.s32.totalorder %s28, 0
        %s349 = scalar_select %p348, %s28, 0
        %s350 = sadd.s32 %s349, %s347
        %s351 = smul.addr %s350, 8
        %s352 = scalar_lea.vmem %s0, %s351
        %v353 = vld [vmem:[%s352] sm:$0xff]
        %v354 = vadd.f32 %v353, %v353
        %v355 = vld [vmem:[%s1] sm:$0xff]
        %v356 = vld [vmem:[%s2] sm:$0xff]
        %358 = vset.pattern.permute.xlu0 0
        %359 = vperm.xlu0 %358, %v356
        %v360 = vpop.permute.xlu0 %359
        %vm362 = vcmask 64512
        %v364 = vsel %vm362, %v355, 0
        %366 = vmatprep.subr.mxu0 0.0
        %367 = vmatpush1.msra.mxu0 0.0
        %368 = vmatprep.subr.mxu0 0.0
        %369 = vmatpush1.msra.mxu0 0.0
        %370 = vmatprep.subr.mxu0 0.0
        %371 = vmatpush1.msra.mxu0 0.0
        %372 = vmatprep.subr.mxu0 0.0
        %373 = vmatpush1.msra.mxu0 0.0
        %374 = vmatprep.subr.mxu0 0.0
        %375 = vmatpush1.msra.mxu0 0.0
        %376 = vmatprep.subr.mxu0 0.0
        %377 = vmatpush1.msra.mxu0 0.0
        %378 = vmatprep.subr.mxu0 0.0
        %379 = vmatpush1.msra.mxu0 0.0
        %380 = vmatprep.subr.mxu0 0.0
        %381 = vmatpush1.msra.mxu0 0.0
        %382 = vmatprep.subr.mxu0 0.0
        %383 = vmatpush1.msra.mxu0 0.0
        %384 = vmatprep.subr.mxu0 0.0
        %385 = vmatpush1.msra.mxu0 0.0
        %386 = vmatprep.subr.mxu0 0.0
        %387 = vmatpush1.msra.mxu0 0.0
        %388 = vmatprep.subr.mxu0 0.0
        %389 = vmatpush1.msra.mxu0 0.0
        %390 = vmatprep.subr.mxu0 0.0
        %391 = vmatpush1.msra.mxu0 0.0
        %392 = vmatprep.subr.mxu0 0.0
        %393 = vmatpush1.msra.mxu0 0.0
        %394 = vmatprep.subr.mxu0 0.0
        %395 = vmatpush1.msra.mxu0 0.0
        %396 = vmatprep.subr.mxu0 0.0
        %397 = vmatpush1.msra.mxu0 %v353
        %398 = vmatprep.subr.mxu0 0.0
        %399 = vmatpush2.msra.mxu0 0.0
        %400 = vmatprep.subr.mxu0 0.0
        %401 = vmatpush2.msra.mxu0 0.0
        %402 = vmatprep.subr.mxu0 0.0
        %403 = vmatpush2.msra.mxu0 0.0
        %404 = vmatprep.subr.mxu0 0.0
        %405 = vmatpush2.msra.mxu0 0.0
        %406 = vmatprep.subr.mxu0 0.0
        %407 = vmatpush2.msra.mxu0 0.0
        %408 = vmatprep.subr.mxu0 0.0
        %409 = vmatpush2.msra.mxu0 0.0
        %410 = vmatprep.subr.mxu0 0.0
        %411 = vmatpush2.msra.mxu0 0.0
        %412 = vmatprep.subr.mxu0 0.0
        %413 = vmatpush2.msra.mxu0 0.0
        %414 = vmatprep.subr.mxu0 0.0
        %415 = vmatpush2.msra.mxu0 0.0
        %416 = vmatprep.subr.mxu0 0.0
        %417 = vmatpush2.msra.mxu0 0.0
        %418 = vmatprep.subr.mxu0 0.0
        %419 = vmatpush2.msra.mxu0 0.0
        %420 = vmatprep.subr.mxu0 0.0
        %421 = vmatpush2.msra.mxu0 0.0
        %422 = vmatprep.subr.mxu0 0.0
        %423 = vmatpush2.msra.mxu0 0.0
        %424 = vmatprep.subr.mxu0 0.0
        %425 = vmatpush2.msra.mxu0 0.0
        %426 = vmatprep.subr.mxu0 0.0
        %427 = vmatpush2.msra.mxu0 0.0
        %428 = vmatprep.subr.mxu0 0.0
        %429 = vmatpush2.msra.mxu0 0.0
        %430 = vmatprep.mubr.f32.mxu0 0.0
        %431 = vmatmul.mubr.f32.gmra.mxu0 %v364
        %v432 = vpop.f32.mrf.mxu0
        %v433 = vadd.f32 %v360, %v432
        %v434 = vpop.f32.mrf.mxu0
        %435 = vdwg.mxu0
        %v436 = vmax.f32 %v433, 0.0
        %v437 = vld [vmem:[%s3] sm:$0xff]
        %v438 = vld [vmem:[%s4] sm:$0xff]
        %440 = vset.pattern.permute.xlu0 0
        %441 = vperm.xlu0 %440, %v438
        %v442 = vpop.permute.xlu0 %441
        %v445 = vsel %vm362, %v437, 0
        %447 = vmatprep.subr.mxu0 0.0
        %448 = vmatpush1.msra.mxu0 0.0
        %449 = vmatprep.subr.mxu0 0.0
        %450 = vmatpush1.msra.mxu0 0.0
        %451 = vmatprep.subr.mxu0 0.0
        %452 = vmatpush1.msra.mxu0 0.0
        %453 = vmatprep.subr.mxu0 0.0
        %454 = vmatpush1.msra.mxu0 0.0
        %455 = vmatprep.subr.mxu0 0.0
        %456 = vmatpush1.msra.mxu0 0.0
        %457 = vmatprep.subr.mxu0 0.0
        %458 = vmatpush1.msra.mxu0 0.0
        %459 = vmatprep.subr.mxu0 0.0
        %460 = vmatpush1.msra.mxu0 0.0
        %461 = vmatprep.subr.mxu0 0.0
        %462 = vmatpush1.msra.mxu0 0.0
        %463 = vmatprep.subr.mxu0 0.0
        %464 = vmatpush1.msra.mxu0 0.0
        %465 = vmatprep.subr.mxu0 0.0
        %466 = vmatpush1.msra.mxu0 0.0
        %467 = vmatprep.subr.mxu0 0.0
        %468 = vmatpush1.msra.mxu0 0.0
        %469 = vmatprep.subr.mxu0 0.0
        %470 = vmatpush1.msra.mxu0 0.0
        %471 = vmatprep.subr.mxu0 0.0
        %472 = vmatpush1.msra.mxu0 0.0
        %473 = vmatprep.subr.mxu0 0.0
        %474 = vmatpush1.msra.mxu0 0.0
        %475 = vmatprep.subr.mxu0 0.0
        %476 = vmatpush1.msra.mxu0 0.0
        %477 = vmatprep.subr.mxu0 0.0
        %478 = vmatpush1.msra.mxu0 %v436
        %479 = vmatprep.subr.mxu0 0.0
        %480 = vmatpush2.msra.mxu0 0.0
        %481 = vmatprep.subr.mxu0 0.0
        %482 = vmatpush2.msra.mxu0 0.0
        %483 = vmatprep.subr.mxu0 0.0
        %484 = vmatpush2.msra.mxu0 0.0
        %485 = vmatprep.subr.mxu0 0.0
        %486 = vmatpush2.msra.mxu0 0.0
        %487 = vmatprep.subr.mxu0 0.0
        %488 = vmatpush2.msra.mxu0 0.0
        %489 = vmatprep.subr.mxu0 0.0
        %490 = vmatpush2.msra.mxu0 0.0
        %491 = vmatprep.subr.mxu0 0.0
        %492 = vmatpush2.msra.mxu0 0.0
        %493 = vmatprep.subr.mxu0 0.0
        %494 = vmatpush2.msra.mxu0 0.0
        %495 = vmatprep.subr.mxu0 0.0
        %496 = vmatpush2.msra.mxu0 0.0
        %497 = vmatprep.subr.mxu0 0.0
        %498 = vmatpush2.msra.mxu0 0.0
        %499 = vmatprep.subr.mxu0 0.0
        %500 = vmatpush2.msra.mxu0 0.0
        %501 = vmatprep.subr.mxu0 0.0
        %502 = vmatpush2.msra.mxu0 0.0
        %503 = vmatprep.subr.mxu0 0.0
        %504 = vmatpush2.msra.mxu0 0.0
        %505 = vmatprep.subr.mxu0 0.0
        %506 = vmatpush2.msra.mxu0 0.0
        %507 = vmatprep.subr.mxu0 0.0
        %508 = vmatpush2.msra.mxu0 0.0
        %509 = vmatprep.subr.mxu0 0.0
        %510 = vmatpush2.msra.mxu0 0.0
        %511 = vmatprep.mubr.f32.mxu0 0.0
        %512 = vmatmul.mubr.f32.gmra.mxu0 %v445
        %v513 = vpop.f32.mrf.mxu0
        %v514 = vadd.f32 %v442, %v513
        %v515 = vpop.f32.mrf.mxu0
        %516 = vdwg.mxu0
        %v517 = vmax.f32 %v514, 0.0
        %v518 = vld [vmem:[%s5] sm:$0xff]
        %v519 = vld [vmem:[%s6] sm:$0xff]
        %521 = vset.pattern.permute.xlu0 0
        %522 = vperm.xlu0 %521, %v519
        %v523 = vpop.permute.xlu0 %522
        %v526 = vsel %vm362, %v518, 0
        %528 = vmatprep.subr.mxu0 0.0
        %529 = vmatpush1.msra.mxu0 0.0
        %530 = vmatprep.subr.mxu0 0.0
        %531 = vmatpush1.msra.mxu0 0.0
        %532 = vmatprep.subr.mxu0 0.0
        %533 = vmatpush1.msra.mxu0 0.0
        %534 = vmatprep.subr.mxu0 0.0
        %535 = vmatpush1.msra.mxu0 0.0
        %536 = vmatprep.subr.mxu0 0.0
        %537 = vmatpush1.msra.mxu0 0.0
        %538 = vmatprep.subr.mxu0 0.0
        %539 = vmatpush1.msra.mxu0 0.0
        %540 = vmatprep.subr.mxu0 0.0
        %541 = vmatpush1.msra.mxu0 0.0
        %542 = vmatprep.subr.mxu0 0.0
        %543 = vmatpush1.msra.mxu0 0.0
        %544 = vmatprep.subr.mxu0 0.0
        %545 = vmatpush1.msra.mxu0 0.0
        %546 = vmatprep.subr.mxu0 0.0
        %547 = vmatpush1.msra.mxu0 0.0
        %548 = vmatprep.subr.mxu0 0.0
        %549 = vmatpush1.msra.mxu0 0.0
        %550 = vmatprep.subr.mxu0 0.0
        %551 = vmatpush1.msra.mxu0 0.0
        %552 = vmatprep.subr.mxu0 0.0
        %553 = vmatpush1.msra.mxu0 0.0
        %554 = vmatprep.subr.mxu0 0.0
        %555 = vmatpush1.msra.mxu0 0.0
        %556 = vmatprep.subr.mxu0 0.0
        %557 = vmatpush1.msra.mxu0 0.0
        %558 = vmatprep.subr.mxu0 0.0
        %559 = vmatpush1.msra.mxu0 %v517
        %560 = vmatprep.subr.mxu0 0.0
        %561 = vmatpush2.msra.mxu0 0.0
        %562 = vmatprep.subr.mxu0 0.0
        %563 = vmatpush2.msra.mxu0 0.0
        %564 = vmatprep.subr.mxu0 0.0
        %565 = vmatpush2.msra.mxu0 0.0
        %566 = vmatprep.subr.mxu0 0.0
        %567 = vmatpush2.msra.mxu0 0.0
        %568 = vmatprep.subr.mxu0 0.0
        %569 = vmatpush2.msra.mxu0 0.0
        %570 = vmatprep.subr.mxu0 0.0
        %571 = vmatpush2.msra.mxu0 0.0
        %572 = vmatprep.subr.mxu0 0.0
        %573 = vmatpush2.msra.mxu0 0.0
        %574 = vmatprep.subr.mxu0 0.0
        %575 = vmatpush2.msra.mxu0 0.0
        %576 = vmatprep.subr.mxu0 0.0
        %577 = vmatpush2.msra.mxu0 0.0
        %578 = vmatprep.subr.mxu0 0.0
        %579 = vmatpush2.msra.mxu0 0.0
        %580 = vmatprep.subr.mxu0 0.0
        %581 = vmatpush2.msra.mxu0 0.0
        %582 = vmatprep.subr.mxu0 0.0
        %583 = vmatpush2.msra.mxu0 0.0
        %584 = vmatprep.subr.mxu0 0.0
        %585 = vmatpush2.msra.mxu0 0.0
        %586 = vmatprep.subr.mxu0 0.0
        %587 = vmatpush2.msra.mxu0 0.0
        %588 = vmatprep.subr.mxu0 0.0
        %589 = vmatpush2.msra.mxu0 0.0
        %590 = vmatprep.subr.mxu0 0.0
        %591 = vmatpush2.msra.mxu0 0.0
        %592 = vmatprep.mubr.f32.mxu0 0.0
        %593 = vmatmul.mubr.f32.gmra.mxu0 %v526
        %v594 = vpop.f32.mrf.mxu0
        %v595 = vadd.f32 %v523, %v594
        %v596 = vpop.f32.mrf.mxu0
        %597 = vdwg.mxu0
        %v598 = vmax.f32 %v595, 0.0
        %v599 = vadd.f32 %v598, %v354
        %v600 = vld [vmem:[%s7] sm:$0xff]
        %v601 = vld [vmem:[%s8] sm:$0xff]
        %603 = vset.pattern.permute.xlu0 0
        %604 = vperm.xlu0 %603, %v601
        %v605 = vpop.permute.xlu0 %604
        %v608 = vsel %vm362, %v600, 0
        %610 = vmatprep.subr.mxu0 0.0
        %611 = vmatpush1.msra.mxu0 0.0
        %612 = vmatprep.subr.mxu0 0.0
        %613 = vmatpush1.msra.mxu0 0.0
        %614 = vmatprep.subr.mxu0 0.0
        %615 = vmatpush1.msra.mxu0 0.0
        %616 = vmatprep.subr.mxu0 0.0
        %617 = vmatpush1.msra.mxu0 0.0
        %618 = vmatprep.subr.mxu0 0.0
        %619 = vmatpush1.msra.mxu0 0.0
        %620 = vmatprep.subr.mxu0 0.0
        %621 = vmatpush1.msra.mxu0 0.0
        %622 = vmatprep.subr.mxu0 0.0
        %623 = vmatpush1.msra.mxu0 0.0
        %624 = vmatprep.subr.mxu0 0.0
        %625 = vmatpush1.msra.mxu0 0.0
        %626 = vmatprep.subr.mxu0 0.0
        %627 = vmatpush1.msra.mxu0 0.0
        %628 = vmatprep.subr.mxu0 0.0
        %629 = vmatpush1.msra.mxu0 0.0
        %630 = vmatprep.subr.mxu0 0.0
        %631 = vmatpush1.msra.mxu0 0.0
        %632 = vmatprep.subr.mxu0 0.0
        %633 = vmatpush1.msra.mxu0 0.0
        %634 = vmatprep.subr.mxu0 0.0
        %635 = vmatpush1.msra.mxu0 0.0
        %636 = vmatprep.subr.mxu0 0.0
        %637 = vmatpush1.msra.mxu0 0.0
        %638 = vmatprep.subr.mxu0 0.0
        %639 = vmatpush1.msra.mxu0 0.0
        %640 = vmatprep.subr.mxu0 0.0
        %641 = vmatpush1.msra.mxu0 %v599
        %642 = vmatprep.subr.mxu0 0.0
        %643 = vmatpush2.msra.mxu0 0.0
        %644 = vmatprep.subr.mxu0 0.0
        %645 = vmatpush2.msra.mxu0 0.0
        %646 = vmatprep.subr.mxu0 0.0
        %647 = vmatpush2.msra.mxu0 0.0
        %648 = vmatprep.subr.mxu0 0.0
        %649 = vmatpush2.msra.mxu0 0.0
        %650 = vmatprep.subr.mxu0 0.0
        %651 = vmatpush2.msra.mxu0 0.0
        %652 = vmatprep.subr.mxu0 0.0
        %653 = vmatpush2.msra.mxu0 0.0
        %654 = vmatprep.subr.mxu0 0.0
        %655 = vmatpush2.msra.mxu0 0.0
        %656 = vmatprep.subr.mxu0 0.0
        %657 = vmatpush2.msra.mxu0 0.0
        %658 = vmatprep.subr.mxu0 0.0
        %659 = vmatpush2.msra.mxu0 0.0
        %660 = vmatprep.subr.mxu0 0.0
        %661 = vmatpush2.msra.mxu0 0.0
        %662 = vmatprep.subr.mxu0 0.0
        %663 = vmatpush2.msra.mxu0 0.0
        %664 = vmatprep.subr.mxu0 0.0
        %665 = vmatpush2.msra.mxu0 0.0
        %666 = vmatprep.subr.mxu0 0.0
        %667 = vmatpush2.msra.mxu0 0.0
        %668 = vmatprep.subr.mxu0 0.0
        %669 = vmatpush2.msra.mxu0 0.0
        %670 = vmatprep.subr.mxu0 0.0
        %671 = vmatpush2.msra.mxu0 0.0
        %672 = vmatprep.subr.mxu0 0.0
        %673 = vmatpush2.msra.mxu0 0.0
        %674 = vmatprep.mubr.f32.mxu0 0.0
        %675 = vmatmul.mubr.f32.gmra.mxu0 %v608
        %v676 = vpop.f32.mrf.mxu0
        %v677 = vadd.f32 %v605, %v676
        %v678 = vpop.f32.mrf.mxu0
        %679 = vdwg.mxu0
        %v680 = vmax.f32 %v677, 0.0
        %681 = vst [vmem:[%s345] sm:$0xff] %v680
        %s682 = sand.u32 %s241, 1
        %s683 = scalar_lea.sflag [#allocation3], %s682
        %s684 = sand.u32 %s241, 1
        %s685 = smul.addr %s684, 8
        %s686 = scalar_lea.vmem [#allocation2], %s685
        // Predicated region
        $region57: #{tpu_custom_call.1} parent=55 // pred_check
          %p687 = pneg %p251
        $region58: #{tpu_custom_call.1} parent=55 // pred_check_branch
          %689 = sbr.rel (%p687) target = $region60
        $region59: #{tpu_custom_call.1} parent=55 // pred_region
          %s691 = ssub.s32 128, 128
          %692 = vsyncadd %s683, %s691
          %s693 = sadd.s32 %s28, %s27
          %s694 = smul.addr %s693, 128
          %s695 = scalar_lea.hbm %s9, %s694
          %s697 = sshll.u32 %s686, 4
          %s698 = int_to_ptr.vmem [resolvable:$true] %s697
          %700 = dma.vmem_to_hbm [thread:$0]  %s698, 128, %s695, %s683
        $region60: #{tpu_custom_call.1} parent=55 // pred_fallthru
          _
      $region56: #{tpu_custom_call.1} parent=5 // pred_fallthru
        _
      %p701 = scmp.le.s32.totalorder 2, %s18
      // Predicated region
      $region61: #{tpu_custom_call.1} parent=5 // pred_check
        %p702 = pneg %p701
      $region62: #{tpu_custom_call.1} parent=5 // pred_check_branch
        %704 = sbr.rel (%p702) target = $region64
      $region63: #{tpu_custom_call.1} parent=5 // pred_region
        %s705 = ssub.s32 %s18, 2
        // Predicated region
        $region65: #{tpu_custom_call.1} parent=63 // pred_check
          %p706 = pneg %p257
        $region66: #{tpu_custom_call.1} parent=63 // pred_check_branch
          %708 = sbr.rel (%p706) target = $region68
        $region67: #{tpu_custom_call.1} parent=63 // pred_region
          %s709 = sand.u32 %s242, 1
          %s710 = scalar_lea.sflag [#allocation3], %s709
          %s711 = sand.u32 %s242, 1
          %s712 = smul.addr %s711, 8
          %s713 = scalar_lea.vmem [#allocation2], %s712
          %714 = dma.done %s710, 128
        $region68: #{tpu_custom_call.1} parent=63 // pred_fallthru
          _
      $region64: #{tpu_custom_call.1} parent=5 // pred_fallthru
        _
    $region6: #{tpu_custom_call.1} parent=1 // loop_footer
      %s22 = sadd.s32 1, %s18
    $region7: #{tpu_custom_call.1} parent=1 // loop_footer_branch
      %17 = sbr.rel target = $region3
    $region8: #{tpu_custom_call.1} parent=1 // loop_exit
      _
    %715 = vsyncpa [#allocation3], 1
    %s716 = scalar_lea.sflag [#allocation3], 1
    %717 = vsyncpa %s716, 1

// kernel: tpu_custom_call.1
$region0: #{tpu_custom_call.1}
  #allocation0 [shape = 'u32[]', space=smem, size = 0x4, offset = 0x4, fixed_abs, tag = 'smem constant byte address 0x4 - core index']
  #allocation1 [shape = 'u32[144,128]{1,0:T(1,128)}', space=vmem, size = 0x12000, scoped, tag = 'internal scratch']
  %s0 = inlined_call_operand.vmem [shape: f32[2,8,128], index: 0, kind: input, shape index: {}]
  %s1 = inlined_call_operand.vmem [shape: f32[8,8], index: 1, kind: input, shape index: {}]
  %s2 = inlined_call_operand.vmem [shape: f32[8,1], index: 2, kind: input, shape index: {}]
  %s3 = inlined_call_operand.vmem [shape: f32[8,8], index: 3, kind: input, shape index: {}]
  %s4 = inlined_call_operand.vmem [shape: f32[8,1], index: 4, kind: input, shape index: {}]
  %s5 = inlined_call_operand.vmem [shape: f32[8,8], index: 5, kind: input, shape index: {}]
  %s6 = inlined_call_operand.vmem [shape: f32[8,1], index: 6, kind: input, shape index: {}]
  %s7 = inlined_call_operand.vmem [shape: f32[8,8], index: 7, kind: input, shape index: {}]
  %s8 = inlined_call_operand.vmem [shape: f32[8,1], index: 8, kind: input, shape index: {}]
  %s9 = inlined_call_operand.hbm [shape: f32[2,8,128], index: 9, kind: output, shape index: {}]
  %s10 = sld [smem:[#allocation0]]
  $region69: #{tpu_custom_call.1} parent=0
    _
  %s12 = ssub.s32 1, %s10
  %s13 = scalar_select 0, %s12, %s10
  $region1: #{tpu_custom_call.1} parent=0
    #allocation2 [shape = 'u8[8192]{0}', space=vmem, size = 0x2000, scoped, tag = 'output window, operand 0']
    #allocation3 [shape = 's32[2]{0}', space=sflag, size = 0x8, scoped, tag = 'scoped memory for tpu_custom_call.1']
    %14 = vsyncpa [#allocation3], 0
    %s15 = scalar_lea.sflag [#allocation3], 1
    %16 = vsyncpa %s15, 0
    loop: start=0, step=1, limit=4
    $region2: #{tpu_custom_call.1} parent=1 // loop_pre_header
      _
    $region3: #{tpu_custom_call.1} parent=1 // loop_header
      %s18 = sphi 0, %s22
      %p19 = scmp.ge.s32.totalorder %s18, 4
      %s25 = sphi 0, %s37
      %s26 = sphi 0, %s33
      %s27 = sphi 0, %s25
      %s28 = sphi 0, %s26
      %s29 = sphi 0, %s27
      %s30 = sphi 0, %s28
      %s42 = sphi 0, %s44
      %s45 = sphi 0, %s42
      %s46 = sphi 0, %s45
      %s62 = sphi 0, %s46
      %s66 = sphi 0, %s66
      %s68 = sphi 0, %s66
      %s69 = sphi 0, %s68
      %s83 = sphi 0, %s69
      %s87 = sphi 0, %s87
      %s89 = sphi 0, %s87
      %s90 = sphi 0, %s89
      %s104 = sphi 0, %s90
      %s108 = sphi 0, %s108
      %s110 = sphi 0, %s108
      %s111 = sphi 0, %s110
      %s125 = sphi 0, %s111
      %s129 = sphi 0, %s129
      %s131 = sphi 0, %s129
      %s132 = sphi 0, %s131
      %s146 = sphi 0, %s132
      %s150 = sphi 0, %s150
      %s152 = sphi 0, %s150
      %s153 = sphi 0, %s152
      %s167 = sphi 0, %s153
      %s171 = sphi 0, %s171
      %s173 = sphi 0, %s171
      %s174 = sphi 0, %s173
      %s188 = sphi 0, %s174
      %s192 = sphi 0, %s192
      %s194 = sphi 0, %s192
      %s195 = sphi 0, %s194
      %s209 = sphi 0, %s195
      %s213 = sphi 0, %s213
      %s215 = sphi 0, %s213
      %s216 = sphi 0, %s215
      %s230 = sphi 0, %s216
      %s238 = sphi 0, %s240
      %s241 = sphi 0, %s238
      %s242 = sphi 0, %s241
      %s258 = sphi 0, %s242
    $region4: #{tpu_custom_call.1} parent=1 // loop_header_branch
      %21 = sbr.rel (%p19) target = $region8
    $region5: #{tpu_custom_call.1} parent=1 // loop_body
      %s23 = ssub.s32 %s18, 1
      %s24 = ssub.s32 %s18, 2
      %s31 = sadd.s32 1, %s26
      %p32 = scmp.ge.s32.totalorder %s31, 1
      %s33 = scalar_select %p32, 0, %s31
      %s34 = sadd.s32 1, %s25
      %s35 = scalar_select %p32, %s34, %s25
      %p36 = scmp.ge.s32.totalorder %s35, 2
      %s37 = scalar_select %p36, 0, %s35
      %s38 = ssub.s32 %s25, %s37
      %s39 = ssub.s32 %s26, %s33
      %s40 = sor.u32 %s38, %s39
      %p41 = scmp.eq.s32.totalorder %s40, 0
      %s43 = sadd.s32 %s42, 1
      %s44 = scalar_select %p41, %s42, %s43
      %p47 = pneg %p41
      %p48 = scmp.eq.s32.totalorder %s18, 1
      %p49 = por %p47, %p48
      %p50 = scmp.ne.s32.totalorder %s42, %s45
      %p51 = scmp.eq.s32.totalorder %s18, 0
      %p52 = por %p50, %p51
      %p53 = scmp.ne.s32.totalorder %s42, %s45
      %p54 = scmp.eq.s32.totalorder %s23, 1
      %p55 = por %p53, %p54
      %p56 = scmp.ne.s32.totalorder %s45, %s46
      %p57 = scmp.eq.s32.totalorder %s23, 0
      %p58 = por %p56, %p57
      %p59 = scmp.ne.s32.totalorder %s45, %s46
      %p60 = scmp.eq.s32.totalorder %s24, 1
      %p61 = por %p59, %p60
      %p63 = scmp.ne.s32.totalorder %s46, %s62
      %p64 = scmp.eq.s32.totalorder %s24, 0
      %p65 = por %p63, %p64
      %s67 = sadd.s32 %s66, 1
      %p70 = scmp.eq.s32.totalorder %s18, 1
      %p71 = scmp.ne.s32.totalorder %s66, %s68
      %p72 = scmp.eq.s32.totalorder %s18, 0
      %p73 = por %p71, %p72
      %p74 = scmp.ne.s32.totalorder %s66, %s68
      %p75 = scmp.eq.s32.totalorder %s23, 1
      %p76 = por %p74, %p75
      %p77 = scmp.ne.s32.totalorder %s68, %s69
      %p78 = scmp.eq.s32.totalorder %s23, 0
      %p79 = por %p77, %p78
      %p80 = scmp.ne.s32.totalorder %s68, %s69
      %p81 = scmp.eq.s32.totalorder %s24, 1
      %p82 = por %p80, %p81
      %p84 = scmp.ne.s32.totalorder %s69, %s83
      %p85 = scmp.eq.s32.totalorder %s24, 0
      %p86 = por %p84, %p85
      %s88 = sadd.s32 %s87, 1
      %p91 = scmp.eq.s32.totalorder %s18, 1
      %p92 = scmp.ne.s32.totalorder %s87, %s89
      %p93 = scmp.eq.s32.totalorder %s18, 0
      %p94 = por %p92, %p93
      %p95 = scmp.ne.s32.totalorder %s87, %s89
      %p96 = scmp.eq.s32.totalorder %s23, 1
      %p97 = por %p95, %p96
      %p98 = scmp.ne.s32.totalorder %s89, %s90
      %p99 = scmp.eq.s32.totalorder %s23, 0
      %p100 = por %p98, %p99
      %p101 = scmp.ne.s32.totalorder %s89, %s90
      %p102 = scmp.eq.s32.totalorder %s24, 1
      %p103 = por %p101, %p102
      %p105 = scmp.ne.s32.totalorder %s90, %s104
      %p106 = scmp.eq.s32.totalorder %s24, 0
      %p107 = por %p105, %p106
      %s109 = sadd.s32 %s108, 1
      %p112 = scmp.eq.s32.totalorder %s18, 1
      %p113 = scmp.ne.s32.totalorder %s108, %s110
      %p114 = scmp.eq.s32.totalorder %s18, 0
      %p115 = por %p113, %p114
      %p116 = scmp.ne.s32.totalorder %s108, %s110
      %p117 = scmp.eq.s32.totalorder %s23, 1
      %p118 = por %p116, %p117
      %p119 = scmp.ne.s32.totalorder %s110, %s111
      %p120 = scmp.eq.s32.totalorder %s23, 0
      %p121 = por %p119, %p120
      %p122 = scmp.ne.s32.totalorder %s110, %s111
      %p123 = scmp.eq.s32.totalorder %s24, 1
      %p124 = por %p122, %p123
      %p126 = scmp.ne.s32.totalorder %s111, %s125
      %p127 = scmp.eq.s32.totalorder %s24, 0
      %p128 = por %p126, %p127
      %s130 = sadd.s32 %s129, 1
      %p133 = scmp.eq.s32.totalorder %s18, 1
      %p134 = scmp.ne.s32.totalorder %s129, %s131
      %p135 = scmp.eq.s32.totalorder %s18, 0
      %p136 = por %p134, %p135
      %p137 = scmp.ne.s32.totalorder %s129, %s131
      %p138 = scmp.eq.s32.totalorder %s23, 1
      %p139 = por %p137, %p138
      %p140 = scmp.ne.s32.totalorder %s131, %s132
      %p141 = scmp.eq.s32.totalorder %s23, 0
      %p142 = por %p140, %p141
      %p143 = scmp.ne.s32.totalorder %s131, %s132
      %p144 = scmp.eq.s32.totalorder %s24, 1
      %p145 = por %p143, %p144
      %p147 = scmp.ne.s32.totalorder %s132, %s146
      %p148 = scmp.eq.s32.totalorder %s24, 0
      %p149 = por %p147, %p148
      %s151 = sadd.s32 %s150, 1
      %p154 = scmp.eq.s32.totalorder %s18, 1
      %p155 = scmp.ne.s32.totalorder %s150, %s152
      %p156 = scmp.eq.s32.totalorder %s18, 0
      %p157 = por %p155, %p156
      %p158 = scmp.ne.s32.totalorder %s150, %s152
      %p159 = scmp.eq.s32.totalorder %s23, 1
      %p160 = por %p158, %p159
      %p161 = scmp.ne.s32.totalorder %s152, %s153
      %p162 = scmp.eq.s32.totalorder %s23, 0
      %p163 = por %p161, %p162
      %p164 = scmp.ne.s32.totalorder %s152, %s153
      %p165 = scmp.eq.s32.totalorder %s24, 1
      %p166 = por %p164, %p165
      %p168 = scmp.ne.s32.totalorder %s153, %s167
      %p169 = scmp.eq.s32.totalorder %s24, 0
      %p170 = por %p168, %p169
      %s172 = sadd.s32 %s171, 1
      %p175 = scmp.eq.s32.totalorder %s18, 1
      %p176 = scmp.ne.s32.totalorder %s171, %s173
      %p177 = scmp.eq.s32.totalorder %s18, 0
      %p178 = por %p176, %p177
      %p179 = scmp.ne.s32.totalorder %s171, %s173
      %p180 = scmp.eq.s32.totalorder %s23, 1
      %p181 = por %p179, %p180
      %p182 = scmp.ne.s32.totalorder %s173, %s174
      %p183 = scmp.eq.s32.totalorder %s23, 0
      %p184 = por %p182, %p183
      %p185 = scmp.ne.s32.totalorder %s173, %s174
      %p186 = scmp.eq.s32.totalorder %s24, 1
      %p187 = por %p185, %p186
      %p189 = scmp.ne.s32.totalorder %s174, %s188
      %p190 = scmp.eq.s32.totalorder %s24, 0
      %p191 = por %p189, %p190
      %s193 = sadd.s32 %s192, 1
      %p196 = scmp.eq.s32.totalorder %s18, 1
      %p197 = scmp.ne.s32.totalorder %s192, %s194
      %p198 = scmp.eq.s32.totalorder %s18, 0
      %p199 = por %p197, %p198
      %p200 = scmp.ne.s32.totalorder %s192, %s194
      %p201 = scmp.eq.s32.totalorder %s23, 1
      %p202 = por %p200, %p201
      %p203 = scmp.ne.s32.totalorder %s194, %s195
      %p204 = scmp.eq.s32.totalorder %s23, 0
      %p205 = por %p203, %p204
      %p206 = scmp.ne.s32.totalorder %s194, %s195
      %p207 = scmp.eq.s32.totalorder %s24, 1
      %p208 = por %p206, %p207
      %p210 = scmp.ne.s32.totalorder %s195, %s209
      %p211 = scmp.eq.s32.totalorder %s24, 0
      %p212 = por %p210, %p211
      %s214 = sadd.s32 %s213, 1
      %p217 = scmp.eq.s32.totalorder %s18, 1
      %p218 = scmp.ne.s32.totalorder %s213, %s215
      %p219 = scmp.eq.s32.totalorder %s18, 0
      %p220 = por %p218, %p219
      %p221 = scmp.ne.s32.totalorder %s213, %s215
      %p222 = scmp.eq.s32.totalorder %s23, 1
      %p223 = por %p221, %p222
      %p224 = scmp.ne.s32.totalorder %s215, %s216
      %p225 = scmp.eq.s32.totalorder %s23, 0
      %p226 = por %p224, %p225
      %p227 = scmp.ne.s32.totalorder %s215, %s216
      %p228 = scmp.eq.s32.totalorder %s24, 1
      %p229 = por %p227, %p228
      %p231 = scmp.ne.s32.totalorder %s216, %s230
      %p232 = scmp.eq.s32.totalorder %s24, 0
      %p233 = por %p231, %p232
      %s234 = ssub.s32 %s25, %s37
      %s235 = ssub.s32 %s26, %s33
      %s236 = sor.u32 %s234, %s235
      %p237 = scmp.eq.s32.totalorder %s236, 0
      %s239 = sadd.s32 %s238, 1
      %s240 = scalar_select %p237, %s238, %s239
      %p243 = pneg %p237
      %p244 = scmp.eq.s32.totalorder %s18, 1
      %p245 = por %p243, %p244
      %p246 = scmp.ne.s32.totalorder %s238, %s241
      %p247 = scmp.eq.s32.totalorder %s18, 0
      %p248 = por %p246, %p247
      %p249 = scmp.ne.s32.totalorder %s238, %s241
      %p250 = scmp.eq.s32.totalorder %s23, 1
      %p251 = por %p249, %p250
      %p252 = scmp.ne.s32.totalorder %s241, %s242
      %p253 = scmp.eq.s32.totalorder %s23, 0
      %p254 = por %p252, %p253
      %p255 = scmp.ne.s32.totalorder %s241, %s242
      %p256 = scmp.eq.s32.totalorder %s24, 1
      %p257 = por %p255, %p256
      %p259 = scmp.ne.s32.totalorder %s242, %s258
      %p260 = scmp.eq.s32.totalorder %s24, 0
      %p261 = por %p259, %p260
      %p262 = scmp.le.s32.totalorder 1, %s18
      %p263 = scmp.lt.s32.totalorder %s18, 3
      %p264 = pnand %p262, %p263
      %p265 = pneg %p264
      // Predicated region
      $region9: #{tpu_custom_call.1} parent=5 // pred_check
        _
      $region10: #{tpu_custom_call.1} parent=5 // pred_check_branch
        %267 = sbr.rel (%p264) target = $region12
      $region11: #{tpu_custom_call.1} parent=5 // pred_region
        %s268 = ssub.s32 %s18, 1
        // Predicated region
        $region13: #{tpu_custom_call.1} parent=11 // pred_check
          %p269 = pneg %p79
        $region14: #{tpu_custom_call.1} parent=11 // pred_check_branch
          %271 = sbr.rel (%p269) target = $region16
        $region15: #{tpu_custom_call.1} parent=11 // pred_region
          _
        $region16: #{tpu_custom_call.1} parent=11 // pred_fallthru
          _
        // Predicated region
        $region17: #{tpu_custom_call.1} parent=11 // pred_check
          %p272 = pneg %p100
        $region18: #{tpu_custom_call.1} parent=11 // pred_check_branch
          %274 = sbr.rel (%p272) target = $region20
        $region19: #{tpu_custom_call.1} parent=11 // pred_region
          _
        $region20: #{tpu_custom_call.1} parent=11 // pred_fallthru
          _
        // Predicated region
        $region21: #{tpu_custom_call.1} parent=11 // pred_check
          %p275 = pneg %p121
        $region22: #{tpu_custom_call.1} parent=11 // pred_check_branch
          %277 = sbr.rel (%p275) target = $region24
        $region23: #{tpu_custom_call.1} parent=11 // pred_region
          _
        $region24: #{tpu_custom_call.1} parent=11 // pred_fallthru
          _
        // Predicated region
        $region25: #{tpu_custom_call.1} parent=11 // pred_check
          %p278 = pneg %p142
        $region26: #{tpu_custom_call.1} parent=11 // pred_check_branch
          %280 = sbr.rel (%p278) target = $region28
        $region27: #{tpu_custom_call.1} parent=11 // pred_region
          _
        $region28: #{tpu_custom_call.1} parent=11 // pred_fallthru
          _
        // Predicated region
        $region29: #{tpu_custom_call.1} parent=11 // pred_check
          %p281 = pneg %p163
        $region30: #{tpu_custom_call.1} parent=11 // pred_check_branch
          %283 = sbr.rel (%p281) target = $region32
        $region31: #{tpu_custom_call.1} parent=11 // pred_region
          _
        $region32: #{tpu_custom_call.1} parent=11 // pred_fallthru
          _
        // Predicated region
        $region33: #{tpu_custom_call.1} parent=11 // pred_check
          %p284 = pneg %p184
        $region34: #{tpu_custom_call.1} parent=11 // pred_check_branch
          %286 = sbr.rel (%p284) target = $region36
        $region35: #{tpu_custom_call.1} parent=11 // pred_region
          _
        $region36: #{tpu_custom_call.1} parent=11 // pred_fallthru
          _
        // Predicated region
        $region37: #{tpu_custom_call.1} parent=11 // pred_check
          %p287 = pneg %p205
        $region38: #{tpu_custom_call.1} parent=11 // pred_check_branch
          %289 = sbr.rel (%p287) target = $region40
        $region39: #{tpu_custom_call.1} parent=11 // pred_region
          _
        $region40: #{tpu_custom_call.1} parent=11 // pred_fallthru
          _
        // Predicated region
        $region41: #{tpu_custom_call.1} parent=11 // pred_check
          %p290 = pneg %p226
        $region42: #{tpu_custom_call.1} parent=11 // pred_check_branch
          %292 = sbr.rel (%p290) target = $region44
        $region43: #{tpu_custom_call.1} parent=11 // pred_region
          _
        $region44: #{tpu_custom_call.1} parent=11 // pred_fallthru
          _
      $region12: #{tpu_custom_call.1} parent=5 // pred_fallthru
        _
      %p293 = scmp.lt.s32.totalorder %s18, 2
      // Predicated region
      $region45: #{tpu_custom_call.1} parent=5 // pred_check
        %p294 = pneg %p293
      $region46: #{tpu_custom_call.1} parent=5 // pred_check_branch
        %296 = sbr.rel (%p294) target = $region48
      $region47: #{tpu_custom_call.1} parent=5 // pred_region
        // Predicated region
        $region49: #{tpu_custom_call.1} parent=47 // pred_check
          %p297 = pneg %p52
        $region50: #{tpu_custom_call.1} parent=47 // pred_check_branch
          %299 = sbr.rel (%p297) target = $region52
        $region51: #{tpu_custom_call.1} parent=47 // pred_region
          %p300 = scmp.lt.s32.totalorder %s25, 1
          %s301 = scalar_select %p300, %s25, 1
          %p302 = scmp.lt.s32.totalorder %s26, 0
          %s303 = scalar_select %p302, %s26, 0
          %s304 = sadd.s32 %s303, %s301
          %s305 = smul.addr %s304, 8
          %s306 = scalar_lea.vmem %s0, %s305
        $region52: #{tpu_custom_call.1} parent=47 // pred_fallthru
          _
      $region48: #{tpu_custom_call.1} parent=5 // pred_fallthru
        _
      %p307 = scmp.le.s32.totalorder 1, %s18
      %p308 = scmp.lt.s32.totalorder %s18, 3
      %p309 = pnand %p307, %p308
      %p310 = pneg %p309
      // Predicated region
      $region53: #{tpu_custom_call.1} parent=5 // pred_check
        _
      $region54: #{tpu_custom_call.1} parent=5 // pred_check_branch
        %312 = sbr.rel (%p309) target = $region56
      $region55: #{tpu_custom_call.1} parent=5 // pred_region
        %s313 = ssub.s32 %s18, 1
        %p314 = scmp.lt.s32.totalorder %s27, 1
        %s315 = scalar_select %p314, %s27, 1
        %p316 = scmp.lt.s32.totalorder %s28, 0
        %s317 = scalar_select %p316, %s28, 0
        %s318 = sadd.s32 %s317, %s315
        %s319 = smul.addr %s318, 8
        %s320 = scalar_lea.vmem %s0, %s319
        %p321 = pneg %p58
        %p322 = pneg %p55
        %p323 = pneg %p79
        %p324 = pneg %p76
        %p325 = pneg %p100
        %p326 = pneg %p97
        %p327 = pneg %p121
        %p328 = pneg %p118
        %p329 = pneg %p142
        %p330 = pneg %p139
        %p331 = pneg %p163
        %p332 = pneg %p160
        %p333 = pneg %p184
        %p334 = pneg %p181
        %p335 = pneg %p205
        %p336 = pneg %p202
        %p337 = pneg %p226
        %p338 = pneg %p223
        %p339 = pneg %p254
        %p340 = pneg %p251
        %s341 = sand.u32 %s241, 1
        %s342 = scalar_lea.sflag [#allocation3], %s341
        %s343 = sand.u32 %s241, 1
        %s344 = smul.addr %s343, 8
        %s345 = scalar_lea.vmem [#allocation2], %s344
        %p346 = scmp.lt.s32.totalorder %s27, 1
        %s347 = scalar_select %p346, %s27, 1
        %p348 = scmp.lt.s32.totalorder %s28, 0
        %s349 = scalar_select %p348, %s28, 0
        %s350 = sadd.s32 %s349, %s347
        %s351 = smul.addr %s350, 8
        %s352 = scalar_lea.vmem %s0, %s351
        %v353 = vld [vmem:[%s352] sm:$0xff]
        %v354 = vadd.f32 %v353, %v353
        %v355 = vld [vmem:[%s1] sm:$0xff]
        %v356 = vld [vmem:[%s2] sm:$0xff]
        %358 = vset.pattern.permute.xlu0 0
        %359 = vperm.xlu0 %358, %v356
        %v360 = vpop.permute.xlu0 %359
        %vm362 = vcmask 64512
        %v364 = vsel %vm362, %v355, 0
        %366 = vmatprep.subr.mxu0 0.0
        %367 = vmatpush1.msra.mxu0 0.0
        %368 = vmatprep.subr.mxu0 0.0
        %369 = vmatpush1.msra.mxu0 0.0
        %370 = vmatprep.subr.mxu0 0.0
        %371 = vmatpush1.msra.mxu0 0.0
        %372 = vmatprep.subr.mxu0 0.0
        %373 = vmatpush1.msra.mxu0 0.0
        %374 = vmatprep.subr.mxu0 0.0
        %375 = vmatpush1.msra.mxu0 0.0
        %376 = vmatprep.subr.mxu0 0.0
        %377 = vmatpush1.msra.mxu0 0.0
        %378 = vmatprep.subr.mxu0 0.0
        %379 = vmatpush1.msra.mxu0 0.0
        %380 = vmatprep.subr.mxu0 0.0
        %381 = vmatpush1.msra.mxu0 0.0
        %382 = vmatprep.subr.mxu0 0.0
        %383 = vmatpush1.msra.mxu0 0.0
        %384 = vmatprep.subr.mxu0 0.0
        %385 = vmatpush1.msra.mxu0 0.0
        %386 = vmatprep.subr.mxu0 0.0
        %387 = vmatpush1.msra.mxu0 0.0
        %388 = vmatprep.subr.mxu0 0.0
        %389 = vmatpush1.msra.mxu0 0.0
        %390 = vmatprep.subr.mxu0 0.0
        %391 = vmatpush1.msra.mxu0 0.0
        %392 = vmatprep.subr.mxu0 0.0
        %393 = vmatpush1.msra.mxu0 0.0
        %394 = vmatprep.subr.mxu0 0.0
        %395 = vmatpush1.msra.mxu0 0.0
        %396 = vmatprep.subr.mxu0 0.0
        %397 = vmatpush1.msra.mxu0 %v353
        %398 = vmatprep.subr.mxu0 0.0
        %399 = vmatpush2.msra.mxu0 0.0
        %400 = vmatprep.subr.mxu0 0.0
        %401 = vmatpush2.msra.mxu0 0.0
        %402 = vmatprep.subr.mxu0 0.0
        %403 = vmatpush2.msra.mxu0 0.0
        %404 = vmatprep.subr.mxu0 0.0
        %405 = vmatpush2.msra.mxu0 0.0
        %406 = vmatprep.subr.mxu0 0.0
        %407 = vmatpush2.msra.mxu0 0.0
        %408 = vmatprep.subr.mxu0 0.0
        %409 = vmatpush2.msra.mxu0 0.0
        %410 = vmatprep.subr.mxu0 0.0
        %411 = vmatpush2.msra.mxu0 0.0
        %412 = vmatprep.subr.mxu0 0.0
        %413 = vmatpush2.msra.mxu0 0.0
        %414 = vmatprep.subr.mxu0 0.0
        %415 = vmatpush2.msra.mxu0 0.0
        %416 = vmatprep.subr.mxu0 0.0
        %417 = vmatpush2.msra.mxu0 0.0
        %418 = vmatprep.subr.mxu0 0.0
        %419 = vmatpush2.msra.mxu0 0.0
        %420 = vmatprep.subr.mxu0 0.0
        %421 = vmatpush2.msra.mxu0 0.0
        %422 = vmatprep.subr.mxu0 0.0
        %423 = vmatpush2.msra.mxu0 0.0
        %424 = vmatprep.subr.mxu0 0.0
        %425 = vmatpush2.msra.mxu0 0.0
        %426 = vmatprep.subr.mxu0 0.0
        %427 = vmatpush2.msra.mxu0 0.0
        %428 = vmatprep.subr.mxu0 0.0
        %429 = vmatpush2.msra.mxu0 0.0
        %430 = vmatprep.mubr.f32.mxu0 0.0
        %431 = vmatmul.mubr.f32.gmra.mxu0 %v364
        %v432 = vpop.f32.mrf.mxu0
        %v433 = vadd.f32 %v360, %v432
        %v434 = vpop.f32.mrf.mxu0
        %435 = vdwg.mxu0
        %v436 = vmax.f32 %v433, 0.0
        %v437 = vld [vmem:[%s3] sm:$0xff]
        %v438 = vld [vmem:[%s4] sm:$0xff]
        %440 = vset.pattern.permute.xlu0 0
        %441 = vperm.xlu0 %440, %v438
        %v442 = vpop.permute.xlu0 %441
        %v445 = vsel %vm362, %v437, 0
        %447 = vmatprep.subr.mxu0 0.0
        %448 = vmatpush1.msra.mxu0 0.0
        %449 = vmatprep.subr.mxu0 0.0
        %450 = vmatpush1.msra.mxu0 0.0
        %451 = vmatprep.subr.mxu0 0.0
        %452 = vmatpush1.msra.mxu0 0.0
        %453 = vmatprep.subr.mxu0 0.0
        %454 = vmatpush1.msra.mxu0 0.0
        %455 = vmatprep.subr.mxu0 0.0
        %456 = vmatpush1.msra.mxu0 0.0
        %457 = vmatprep.subr.mxu0 0.0
        %458 = vmatpush1.msra.mxu0 0.0
        %459 = vmatprep.subr.mxu0 0.0
        %460 = vmatpush1.msra.mxu0 0.0
        %461 = vmatprep.subr.mxu0 0.0
        %462 = vmatpush1.msra.mxu0 0.0
        %463 = vmatprep.subr.mxu0 0.0
        %464 = vmatpush1.msra.mxu0 0.0
        %465 = vmatprep.subr.mxu0 0.0
        %466 = vmatpush1.msra.mxu0 0.0
        %467 = vmatprep.subr.mxu0 0.0
        %468 = vmatpush1.msra.mxu0 0.0
        %469 = vmatprep.subr.mxu0 0.0
        %470 = vmatpush1.msra.mxu0 0.0
        %471 = vmatprep.subr.mxu0 0.0
        %472 = vmatpush1.msra.mxu0 0.0
        %473 = vmatprep.subr.mxu0 0.0
        %474 = vmatpush1.msra.mxu0 0.0
        %475 = vmatprep.subr.mxu0 0.0
        %476 = vmatpush1.msra.mxu0 0.0
        %477 = vmatprep.subr.mxu0 0.0
        %478 = vmatpush1.msra.mxu0 %v436
        %479 = vmatprep.subr.mxu0 0.0
        %480 = vmatpush2.msra.mxu0 0.0
        %481 = vmatprep.subr.mxu0 0.0
        %482 = vmatpush2.msra.mxu0 0.0
        %483 = vmatprep.subr.mxu0 0.0
        %484 = vmatpush2.msra.mxu0 0.0
        %485 = vmatprep.subr.mxu0 0.0
        %486 = vmatpush2.msra.mxu0 0.0
        %487 = vmatprep.subr.mxu0 0.0
        %488 = vmatpush2.msra.mxu0 0.0
        %489 = vmatprep.subr.mxu0 0.0
        %490 = vmatpush2.msra.mxu0 0.0
        %491 = vmatprep.subr.mxu0 0.0
        %492 = vmatpush2.msra.mxu0 0.0
        %493 = vmatprep.subr.mxu0 0.0
        %494 = vmatpush2.msra.mxu0 0.0
        %495 = vmatprep.subr.mxu0 0.0
        %496 = vmatpush2.msra.mxu0 0.0
        %497 = vmatprep.subr.mxu0 0.0
        %498 = vmatpush2.msra.mxu0 0.0
        %499 = vmatprep.subr.mxu0 0.0
        %500 = vmatpush2.msra.mxu0 0.0
        %501 = vmatprep.subr.mxu0 0.0
        %502 = vmatpush2.msra.mxu0 0.0
        %503 = vmatprep.subr.mxu0 0.0
        %504 = vmatpush2.msra.mxu0 0.0
        %505 = vmatprep.subr.mxu0 0.0
        %506 = vmatpush2.msra.mxu0 0.0
        %507 = vmatprep.subr.mxu0 0.0
        %508 = vmatpush2.msra.mxu0 0.0
        %509 = vmatprep.subr.mxu0 0.0
        %510 = vmatpush2.msra.mxu0 0.0
        %511 = vmatprep.mubr.f32.mxu0 0.0
        %512 = vmatmul.mubr.f32.gmra.mxu0 %v445
        %v513 = vpop.f32.mrf.mxu0
        %v514 = vadd.f32 %v442, %v513
        %v515 = vpop.f32.mrf.mxu0
        %516 = vdwg.mxu0
        %v517 = vmax.f32 %v514, 0.0
        %v518 = vld [vmem:[%s5] sm:$0xff]
        %v519 = vld [vmem:[%s6] sm:$0xff]
        %521 = vset.pattern.permute.xlu0 0
        %522 = vperm.xlu0 %521, %v519
        %v523 = vpop.permute.xlu0 %522
        %v526 = vsel %vm362, %v518, 0
        %528 = vmatprep.subr.mxu0 0.0
        %529 = vmatpush1.msra.mxu0 0.0
        %530 = vmatprep.subr.mxu0 0.0
        %531 = vmatpush1.msra.mxu0 0.0
        %532 = vmatprep.subr.mxu0 0.0
        %533 = vmatpush1.msra.mxu0 0.0
        %534 = vmatprep.subr.mxu0 0.0
        %535 = vmatpush1.msra.mxu0 0.0
        %536 = vmatprep.subr.mxu0 0.0
        %537 = vmatpush1.msra.mxu0 0.0
        %538 = vmatprep.subr.mxu0 0.0
        %539 = vmatpush1.msra.mxu0 0.0
        %540 = vmatprep.subr.mxu0 0.0
        %541 = vmatpush1.msra.mxu0 0.0
        %542 = vmatprep.subr.mxu0 0.0
        %543 = vmatpush1.msra.mxu0 0.0
        %544 = vmatprep.subr.mxu0 0.0
        %545 = vmatpush1.msra.mxu0 0.0
        %546 = vmatprep.subr.mxu0 0.0
        %547 = vmatpush1.msra.mxu0 0.0
        %548 = vmatprep.subr.mxu0 0.0
        %549 = vmatpush1.msra.mxu0 0.0
        %550 = vmatprep.subr.mxu0 0.0
        %551 = vmatpush1.msra.mxu0 0.0
        %552 = vmatprep.subr.mxu0 0.0
        %553 = vmatpush1.msra.mxu0 0.0
        %554 = vmatprep.subr.mxu0 0.0
        %555 = vmatpush1.msra.mxu0 0.0
        %556 = vmatprep.subr.mxu0 0.0
        %557 = vmatpush1.msra.mxu0 0.0
        %558 = vmatprep.subr.mxu0 0.0
        %559 = vmatpush1.msra.mxu0 %v517
        %560 = vmatprep.subr.mxu0 0.0
        %561 = vmatpush2.msra.mxu0 0.0
        %562 = vmatprep.subr.mxu0 0.0
        %563 = vmatpush2.msra.mxu0 0.0
        %564 = vmatprep.subr.mxu0 0.0
        %565 = vmatpush2.msra.mxu0 0.0
        %566 = vmatprep.subr.mxu0 0.0
        %567 = vmatpush2.msra.mxu0 0.0
        %568 = vmatprep.subr.mxu0 0.0
        %569 = vmatpush2.msra.mxu0 0.0
        %570 = vmatprep.subr.mxu0 0.0
        %571 = vmatpush2.msra.mxu0 0.0
        %572 = vmatprep.subr.mxu0 0.0
        %573 = vmatpush2.msra.mxu0 0.0
        %574 = vmatprep.subr.mxu0 0.0
        %575 = vmatpush2.msra.mxu0 0.0
        %576 = vmatprep.subr.mxu0 0.0
        %577 = vmatpush2.msra.mxu0 0.0
        %578 = vmatprep.subr.mxu0 0.0
        %579 = vmatpush2.msra.mxu0 0.0
        %580 = vmatprep.subr.mxu0 0.0
        %581 = vmatpush2.msra.mxu0 0.0
        %582 = vmatprep.subr.mxu0 0.0
        %583 = vmatpush2.msra.mxu0 0.0
        %584 = vmatprep.subr.mxu0 0.0
        %585 = vmatpush2.msra.mxu0 0.0
        %586 = vmatprep.subr.mxu0 0.0
        %587 = vmatpush2.msra.mxu0 0.0
        %588 = vmatprep.subr.mxu0 0.0
        %589 = vmatpush2.msra.mxu0 0.0
        %590 = vmatprep.subr.mxu0 0.0
        %591 = vmatpush2.msra.mxu0 0.0
        %592 = vmatprep.mubr.f32.mxu0 0.0
        %593 = vmatmul.mubr.f32.gmra.mxu0 %v526
        %v594 = vpop.f32.mrf.mxu0
        %v595 = vadd.f32 %v523, %v594
        %v596 = vpop.f32.mrf.mxu0
        %597 = vdwg.mxu0
        %v598 = vmax.f32 %v595, 0.0
        %v599 = vadd.f32 %v598, %v354
        %v600 = vld [vmem:[%s7] sm:$0xff]
        %v601 = vld [vmem:[%s8] sm:$0xff]
        %603 = vset.pattern.permute.xlu0 0
        %604 = vperm.xlu0 %603, %v601
        %v605 = vpop.permute.xlu0 %604
        %v608 = vsel %vm362, %v600, 0
        %610 = vmatprep.subr.mxu0 0.0
        %611 = vmatpush1.msra.mxu0 0.0
        %612 = vmatprep.subr.mxu0 0.0
        %613 = vmatpush1.msra.mxu0 0.0
        %614 = vmatprep.subr.mxu0 0.0
        %615 = vmatpush1.msra.mxu0 0.0
        %616 = vmatprep.subr.mxu0 0.0
        %617 = vmatpush1.msra.mxu0 0.0
        %618 = vmatprep.subr.mxu0 0.0
        %619 = vmatpush1.msra.mxu0 0.0
        %620 = vmatprep.subr.mxu0 0.0
        %621 = vmatpush1.msra.mxu0 0.0
        %622 = vmatprep.subr.mxu0 0.0
        %623 = vmatpush1.msra.mxu0 0.0
        %624 = vmatprep.subr.mxu0 0.0
        %625 = vmatpush1.msra.mxu0 0.0
        %626 = vmatprep.subr.mxu0 0.0
        %627 = vmatpush1.msra.mxu0 0.0
        %628 = vmatprep.subr.mxu0 0.0
        %629 = vmatpush1.msra.mxu0 0.0
        %630 = vmatprep.subr.mxu0 0.0
        %631 = vmatpush1.msra.mxu0 0.0
        %632 = vmatprep.subr.mxu0 0.0
        %633 = vmatpush1.msra.mxu0 0.0
        %634 = vmatprep.subr.mxu0 0.0
        %635 = vmatpush1.msra.mxu0 0.0
        %636 = vmatprep.subr.mxu0 0.0
        %637 = vmatpush1.msra.mxu0 0.0
        %638 = vmatprep.subr.mxu0 0.0
        %639 = vmatpush1.msra.mxu0 0.0
        %640 = vmatprep.subr.mxu0 0.0
        %641 = vmatpush1.msra.mxu0 %v599
        %642 = vmatprep.subr.mxu0 0.0
        %643 = vmatpush2.msra.mxu0 0.0
        %644 = vmatprep.subr.mxu0 0.0
        %645 = vmatpush2.msra.mxu0 0.0
        %646 = vmatprep.subr.mxu0 0.0
        %647 = vmatpush2.msra.mxu0 0.0
        %648 = vmatprep.subr.mxu0 0.0
        %649 = vmatpush2.msra.mxu0 0.0
        %650 = vmatprep.subr.mxu0 0.0
        %651 = vmatpush2.msra.mxu0 0.0
        %652 = vmatprep.subr.mxu0 0.0
        %653 = vmatpush2.msra.mxu0 0.0
        %654 = vmatprep.subr.mxu0 0.0
        %655 = vmatpush2.msra.mxu0 0.0
        %656 = vmatprep.subr.mxu0 0.0
        %657 = vmatpush2.msra.mxu0 0.0
        %658 = vmatprep.subr.mxu0 0.0
        %659 = vmatpush2.msra.mxu0 0.0
        %660 = vmatprep.subr.mxu0 0.0
        %661 = vmatpush2.msra.mxu0 0.0
        %662 = vmatprep.subr.mxu0 0.0
        %663 = vmatpush2.msra.mxu0 0.0
        %664 = vmatprep.subr.mxu0 0.0
        %665 = vmatpush2.msra.mxu0 0.0
        %666 = vmatprep.subr.mxu0 0.0
        %667 = vmatpush2.msra.mxu0 0.0
        %668 = vmatprep.subr.mxu0 0.0
        %669 = vmatpush2.msra.mxu0 0.0
        %670 = vmatprep.subr.mxu0 0.0
        %671 = vmatpush2.msra.mxu0 0.0
        %672 = vmatprep.subr.mxu0 0.0
        %673 = vmatpush2.msra.mxu0 0.0
        %674 = vmatprep.mubr.f32.mxu0 0.0
        %675 = vmatmul.mubr.f32.gmra.mxu0 %v608
        %v676 = vpop.f32.mrf.mxu0
        %v677 = vadd.f32 %v605, %v676
        %v678 = vpop.f32.mrf.mxu0
        %679 = vdwg.mxu0
        %v680 = vmax.f32 %v677, 0.0
        %681 = vst [vmem:[%s345] sm:$0xff] %v680
        %s682 = sand.u32 %s241, 1
        %s683 = scalar_lea.sflag [#allocation3], %s682
        %s684 = sand.u32 %s241, 1
        %s685 = smul.addr %s684, 8
        %s686 = scalar_lea.vmem [#allocation2], %s685
        // Predicated region
        $region57: #{tpu_custom_call.1} parent=55 // pred_check
          %p687 = pneg %p251
        $region58: #{tpu_custom_call.1} parent=55 // pred_check_branch
          %689 = sbr.rel (%p687) target = $region60
        $region59: #{tpu_custom_call.1} parent=55 // pred_region
          %s691 = ssub.s32 128, 128
          %692 = vsyncadd %s683, %s691
          %s693 = sadd.s32 %s28, %s27
          %s694 = smul.addr %s693, 128
          %s695 = scalar_lea.hbm %s9, %s694
          %s697 = sshll.u32 %s686, 4
          %s698 = int_to_ptr.vmem [resolvable:$true] %s697
          %700 = dma.vmem_to_hbm [thread:$0]  %s698, 128, %s695, %s683
        $region60: #{tpu_custom_call.1} parent=55 // pred_fallthru
          _
      $region56: #{tpu_custom_call.1} parent=5 // pred_fallthru
        _
      %p701 = scmp.le.s32.totalorder 2, %s18
      // Predicated region
      $region61: #{tpu_custom_call.1} parent=5 // pred_check
        %p702 = pneg %p701
      $region62: #{tpu_custom_call.1} parent=5 // pred_check_branch
        %704 = sbr.rel (%p702) target = $region64
      $region63: #{tpu_custom_call.1} parent=5 // pred_region
        %s705 = ssub.s32 %s18, 2
        // Predicated region
        $region65: #{tpu_custom_call.1} parent=63 // pred_check
          %p706 = pneg %p257
        $region66: #{tpu_custom_call.1} parent=63 // pred_check_branch
          %708 = sbr.rel (%p706) target = $region68
        $region67: #{tpu_custom_call.1} parent=63 // pred_region
          %s709 = sand.u32 %s242, 1
          %s710 = scalar_lea.sflag [#allocation3], %s709
          %s711 = sand.u32 %s242, 1
          %s712 = smul.addr %s711, 8
          %s713 = scalar_lea.vmem [#allocation2], %s712
          %714 = dma.done %s710, 128
        $region68: #{tpu_custom_call.1} parent=63 // pred_fallthru
          _
      $region64: #{tpu_custom_call.1} parent=5 // pred_fallthru
        _
    $region6: #{tpu_custom_call.1} parent=1 // loop_footer
      %s22 = sadd.s32 1, %s18
    $region7: #{tpu_custom_call.1} parent=1 // loop_footer_branch
      %17 = sbr.rel target = $region3
    $region8: #{tpu_custom_call.1} parent=1 // loop_exit
      _
    %715 = vsyncpa [#allocation3], 1
    %s716 = scalar_lea.sflag [#allocation3], 1
    %717 = vsyncpa %s716, 1

</llo_original>
